<compile_context>
chip_gen: v7x
topology: tpu7x:2x2x1
jax: 0.10.0
libtpu: 0.0.40
codegen_flags: <defaults>
</compile_context>

<pallas_src>
import functools

import jax
import jax.numpy as jnp
from jax.experimental import pallas as pl
from jax.experimental.pallas import tpu as pltpu

VMEM_LIMIT = 32 * 1024 * 1024  # safe on v5e/v6e/v7x; raise further at production shapes


# ----------------------------------------------------------------------------
# Pallas kernel 1: fused per-pixel stack
#   cv1 (3x3 conv as im2col matmul) + BN + SiLU
#   cv2.conv (1x1) + BN + SiLU
#   dcnv4.value_proj and dcnv4.offset_mask   (shared read of the activation)
# Grid = (N, L/TL), both axes parallel; all matmuls bf16 x bf16 -> f32.
# ----------------------------------------------------------------------------
def _pointwise_stack_kernel(x_ref, w1_ref, s1_ref, b1_ref,
                            wpw_ref, s2_ref, b2_ref,
                            wvp_ref, bvp_ref, wom_ref, bom_ref,
                            val_ref, om_ref):
    x = x_ref[0]                                                    # (TL, 9*c1) bf16
    # cv1: 3x3 conv as one im2col matmul, folded BN + SiLU
    h = jnp.dot(x, w1_ref[...], preferred_element_type=jnp.float32)
    h = h * s1_ref[...] + b1_ref[...]
    h = h * jax.nn.sigmoid(h)                                       # SiLU (f32 elementwise)
    # cv2.conv: 1x1 conv, folded BN + SiLU
    y = jnp.dot(h.astype(jnp.bfloat16), wpw_ref[...],
                preferred_element_type=jnp.float32)
    y = y * s2_ref[...] + b2_ref[...]
    y = y * jax.nn.sigmoid(y)
    yb = y.astype(jnp.bfloat16)
    # dcnv4.value_proj / offset_mask fused (one pass over y)
    val = jnp.dot(yb, wvp_ref[...], preferred_element_type=jnp.float32) + bvp_ref[...]
    om = jnp.dot(yb, wom_ref[...], preferred_element_type=jnp.float32) + bom_ref[...]
    val_ref[0] = val.astype(val_ref.dtype)                          # bf16 intermediate
    om_ref[0] = om.astype(om_ref.dtype)                             # f32 (sampling coords)


def pointwise_stack(x_im2col, w1, s1, b1, wpw, s2, b2, wvp, bvp, wom, bom, *, tl):
    N, L, kc1 = x_im2col.shape
    c_ = w1.shape[1]
    c2 = wpw.shape[1]
    om_dim = wom.shape[1]
    flops = 2 * N * L * (kc1 * c_ + c_ * c2 + c2 * c2 + c2 * om_dim)
    bytes_accessed = (x_im2col.size * 2 + N * L * c2 * 2 + N * L * om_dim * 4
                      + (w1.size + wpw.size + wvp.size + wom.size) * 2)
    return pl.pallas_call(
        _pointwise_stack_kernel,
        out_shape=(jax.ShapeDtypeStruct((N, L, c2), jnp.bfloat16),
                   jax.ShapeDtypeStruct((N, L, om_dim), jnp.float32)),
        grid=(N, L // tl),
        in_specs=[
            pl.BlockSpec((1, tl, kc1), lambda n, l: (n, l, 0)),
            pl.BlockSpec((kc1, c_), lambda n, l: (0, 0)),
            pl.BlockSpec((1, c_), lambda n, l: (0, 0)),
            pl.BlockSpec((1, c_), lambda n, l: (0, 0)),
            pl.BlockSpec((c_, c2), lambda n, l: (0, 0)),
            pl.BlockSpec((1, c2), lambda n, l: (0, 0)),
            pl.BlockSpec((1, c2), lambda n, l: (0, 0)),
            pl.BlockSpec((c2, c2), lambda n, l: (0, 0)),
            pl.BlockSpec((1, c2), lambda n, l: (0, 0)),
            pl.BlockSpec((c2, om_dim), lambda n, l: (0, 0)),
            pl.BlockSpec((1, om_dim), lambda n, l: (0, 0)),
        ],
        out_specs=(pl.BlockSpec((1, tl, c2), lambda n, l: (n, l, 0)),
                   pl.BlockSpec((1, tl, om_dim), lambda n, l: (n, l, 0))),
        compiler_params=pltpu.CompilerParams(
            dimension_semantics=("parallel", "parallel"),
            vmem_limit_bytes=VMEM_LIMIT),
        cost_estimate=pl.CostEstimate(flops=flops,
                                      transcendentals=N * L * (c_ + c2),
                                      bytes_accessed=bytes_accessed),
    )(x_im2col, w1, s1, b1, wpw, s2, b2, wvp, bvp, wom, bom)


# ----------------------------------------------------------------------------
# Pallas kernel 2: DCNv4 core + output_proj + BN + SiLU (+ residual), fused.
# Grid = (N, L/TQ): each step handles TQ query pixels against the full-image
# value tensor.  Per query tile, ALL K*4=36 bilinear one-hot contributions
# (mask folded in) are accumulated into a single (TQ, L) interpolation matrix
# and applied with ONE MXU matmul (9x fewer matmul FLOPs than per-tap; VMEM
# bounded by TQ*L instead of L*L).
# TODO(synk): a true dynamic row-gather of the (L,C) value block would make the
#   core O(L*C); Pallas TPU has no general sublane-gather lowering for small C,
#   so the one-hot-matmul formulation is kept (tiled over queries).
# ----------------------------------------------------------------------------
def _dcn_body(val, om, q0, H, W, K, offset_scale):
    TQ = om.shape[0]
    L = val.shape[0]
    # offset_mask is pre-deinterleaved in the wrapper: [ox(9) | oy(9) | m(9) | pad]
    off_x = om[:, 0:K]
    off_y = om[:, K:2 * K]
    m = om[:, 2 * K:3 * K]                                          # raw mask (DCNv4: no softmax)
    lin = q0 + jax.lax.broadcasted_iota(jnp.int32, (TQ, 1), 0)
    py = (lin // W).astype(jnp.float32)
    px = (lin % W).astype(jnp.float32)
    kidx = jax.lax.broadcasted_iota(jnp.int32, (1, K), 1)
    ky = (kidx // 3 - 1).astype(jnp.float32)                        # 3x3, pad=1, dil=1
    kx = (kidx % 3 - 1).astype(jnp.float32)
    sy = py + ky + off_y * offset_scale                             # (TQ, K) all taps at once
    sx = px + kx + off_x * offset_scale
    y0 = jnp.floor(sy)
    x0 = jnp.floor(sx)
    ly = sy - y0
    lx = sx - x0
    col = jax.lax.broadcasted_iota(jnp.int32, (TQ, L), 1)
    wtot = jnp.zeros((TQ, L), jnp.float32)
    for dy, dx in ((0, 0), (0, 1), (1, 0), (1, 1)):
        cy = y0 + dy
        cx = x0 + dx
        wt = (ly if dy else 1.0 - ly) * (lx if dx else 1.0 - lx) * m   # mask folded in
        valid = (cy >= 0) & (cy <= H - 1) & (cx >= 0) & (cx <= W - 1)
        wt = jnp.where(valid, wt, 0.0)                              # zero padding outside image
        idx = jnp.clip(cy.astype(jnp.int32) * W + cx.astype(jnp.int32), 0, L - 1)
        for t in range(K):
            wtot = wtot + jnp.where(col == idx[:, t:t + 1], wt[:, t:t + 1], 0.0)
    # one MXU matmul replaces 9 per-tap gather-matmuls
    return jnp.dot(wtot.astype(jnp.bfloat16), val, preferred_element_type=jnp.float32)


def _dcn_out_kernel(*refs, H, W, K, offset_scale, tq, has_residual):
    if has_residual:
        val_ref, om_ref, res_ref, wop_ref, os_ref, ob_ref, o_ref = refs
    else:
        val_ref, om_ref, wop_ref, os_ref, ob_ref, o_ref = refs
        res_ref = None
    q0 = pl.program_id(1) * tq
    core = _dcn_body(val_ref[0], om_ref[0], q0, H, W, K, offset_scale)   # (TQ, c2) f32
    out = jnp.dot(core.astype(jnp.bfloat16), wop_ref[...],
                  preferred_element_type=jnp.float32)
    out = out * os_ref[...] + ob_ref[...]                           # output_proj bias + BN folded
    out = out * jax.nn.sigmoid(out)                                 # SiLU
    if res_ref is not None:
        out = out + res_ref[0]                                      # bottleneck residual
    o_ref[0] = out.astype(o_ref.dtype)


def dcn_core_output(val, om, wop, out_scale, out_shift, residual, H, W,
                    *, K=9, offset_scale=1.0, tq=128):
    N, L, c2 = val.shape
    om_dim = om.shape[-1]
    if L % tq != 0:
        tq = L
    has_res = residual is not None
    kernel = functools.partial(_dcn_out_kernel, H=H, W=W, K=K,
                               offset_scale=offset_scale, tq=tq,
                               has_residual=has_res)
    in_specs = [
        pl.BlockSpec((1, L, c2), lambda n, q: (n, 0, 0)),           # full-image values (keys)
        pl.BlockSpec((1, tq, om_dim), lambda n, q: (n, q, 0)),      # per-query offsets/masks
    ]
    args = [val, om]
    if has_res:
        in_specs.append(pl.BlockSpec((1, tq, c2), lambda n, q: (n, q, 0)))
        args.append(residual)
    in_specs += [
        pl.BlockSpec((c2, c2), lambda n, q: (0, 0)),
        pl.BlockSpec((1, c2), lambda n, q: (0, 0)),
        pl.BlockSpec((1, c2), lambda n, q: (0, 0)),
    ]
    args += [wop, out_scale, out_shift]
    flops = 2 * N * L * (L * c2 + c2 * c2)
    bytes_accessed = (val.size * 2 + om.size * 4 + wop.size * 2
                      + N * L * c2 * 4 * (2 if has_res else 1))
    return pl.pallas_call(
        kernel,
        out_shape=jax.ShapeDtypeStruct((N, L, c2), jnp.float32),
        grid=(N, L // tq),
        in_specs=in_specs,
        out_specs=pl.BlockSpec((1, tq, c2), lambda n, q: (n, q, 0)),
        compiler_params=pltpu.CompilerParams(
            dimension_semantics=("parallel", "parallel"),
            vmem_limit_bytes=VMEM_LIMIT),
        cost_estimate=pl.CostEstimate(flops=flops,
                                      transcendentals=N * L * c2,
                                      bytes_accessed=bytes_accessed),
    )(*args)


# ----------------------------------------------------------------------------
# Parameters (deterministic synthetic init; BN folded: inference mode)
# ----------------------------------------------------------------------------
def make_params(key, c1, c2, e=0.5, eps=1e-3):
    c_ = int(c2 * e)
    K = 9
    om_dim = ((K * 3 + 7) // 8) * 8                                 # DCNv4 pads K*3 -> 32
    ks = list(jax.random.split(key, 32))
    it = iter(ks)

    def nrm(shape, std):
        return std * jax.random.normal(next(it), shape, jnp.float32)

    def bn_fold(c):
        gamma = 1.0 + 0.1 * jax.random.normal(next(it), (c,), jnp.float32)
        beta = 0.1 * jax.random.normal(next(it), (c,), jnp.float32)
        mean = 0.1 * jax.random.normal(next(it), (c,), jnp.float32)
        var = jax.random.uniform(next(it), (c,), jnp.float32, 0.5, 1.5)
        scale = gamma / jnp.sqrt(var + eps)
        shift = beta - mean * scale
        return scale.reshape(1, c), shift.reshape(1, c)

    P = {}
    P["cv1_w"] = nrm((3, 3, c1, c_), 0.25)                          # HWIO
    P["cv1_scale"], P["cv1_shift"] = bn_fold(c_)
    P["pw_w"] = nrm((c_, c2), 0.35)                                 # cv2.conv 1x1
    P["pw_scale"], P["pw_shift"] = bn_fold(c2)
    P["vp_w"] = nrm((c2, c2), 0.3)                                  # dcnv4.value_proj
    P["vp_b"] = nrm((1, c2), 0.05)
    P["om_w"] = nrm((c2, om_dim), 0.1)                              # dcnv4.offset_mask (interleaved)
    P["om_b"] = nrm((1, om_dim), 0.05)
    P["op_w"] = nrm((c2, c2), 0.3)                                  # dcnv4.output_proj
    op_b = nrm((c2,), 0.05)
    bn2_scale, bn2_shift = bn_fold(c2)                              # DCNV4_Yolo11.bn
    P["out_scale"] = bn2_scale
    P["out_shift"] = bn2_scale * op_b.reshape(1, c2) + bn2_shift    # fold output_proj bias
    return P


# ----------------------------------------------------------------------------
# Full forward (Pallas path)
# ----------------------------------------------------------------------------
def bottleneck_dcnv4_forward(x_nchw, P, *, shortcut=True, tl=128, tq=128):
    N, c1, H, W = x_nchw.shape
    c2 = P["pw_w"].shape[1]
    c_ = P["cv1_w"].shape[-1]
    K = 9
    add = shortcut and (c1 == c2)
    L = H * W
    if L % tl != 0:
        tl = L
    x_nhwc = jnp.transpose(x_nchw, (0, 2, 3, 1))                    # layout glue only

    # im2col for the 3x3 conv (XLA glue): lane-dense (N, L, 9*c1), stored bf16
    xp = jnp.pad(x_nhwc, ((0, 0), (1, 1), (1, 1), (0, 0)))
    cols = [xp[:, i:i + H, j:j + W, :] for i in range(3) for j in range(3)]
    x_im2col = jnp.concatenate(cols, axis=-1).reshape(N, L, 9 * c1).astype(jnp.bfloat16)

    # weights to bf16 for the MXU; deinterleave offset_mask columns once so the
    # kernel reads lane-contiguous [ox(9) | oy(9) | m(9) | pad] instead of 27 lanes
    w1 = P["cv1_w"].reshape(9 * c1, c_).astype(jnp.bfloat16)
    wpw = P["pw_w"].astype(jnp.bfloat16)
    wvp = P["vp_w"].astype(jnp.bfloat16)
    om_dim = P["om_w"].shape[1]
    perm = ([2 * p for p in range(K)] + [2 * p + 1 for p in range(K)]
            + [2 * K + p for p in range(K)] + list(range(3 * K, om_dim)))
    wom = P["om_w"][:, perm].astype(jnp.bfloat16)
    bom = P["om_b"][:, perm]
    wop = P["op_w"].astype(jnp.bfloat16)

    # kernel 1: cv1 + cv2.conv + value_proj + offset_mask (fused, L-tiled)
    val, om = pointwise_stack(x_im2col, w1, P["cv1_scale"], P["cv1_shift"],
                              wpw, P["pw_scale"], P["pw_shift"],
                              wvp, P["vp_b"], wom, bom, tl=tl)
    # kernel 2: DCN core + output_proj + BN + SiLU + residual (fused, query-tiled)
    resid = x_nhwc.reshape(N, L, c1) if add else None
    out = dcn_core_output(val, om, wop, P["out_scale"], P["out_shift"],
                          resid, H, W, K=K, tq=tq)
    return jnp.transpose(out.reshape(N, H, W, c2), (0, 3, 1, 2))


# ----------------------------------------------------------------------------
# Pure-JAX reference (f32, 'highest' precision) for the correctness check
# ----------------------------------------------------------------------------
def _dcn_core_ref(val, om, H, W, K=9, pad=1, dil=1, offset_scale=1.0):
    N, L, C = val.shape
    lin = jnp.arange(L)
    py = (lin // W).astype(jnp.float32)[None, :]
    px = (lin % W).astype(jnp.float32)[None, :]
    out = jnp.zeros((N, L, C), jnp.float32)
    for p in range(K):
        ki, kj = p // 3, p % 3
        off_x = om[:, :, 2 * p]
        off_y = om[:, :, 2 * p + 1]
        m = om[:, :, 2 * K + p]
        sy = py + float(ki * dil - pad) + off_y * offset_scale
        sx = px + float(kj * dil - pad) + off_x * offset_scale
        y0 = jnp.floor(sy)
        x0 = jnp.floor(sx)
        ly = sy - y0
        lx = sx - x0
        samp = jnp.zeros((N, L, C), jnp.float32)
        for dy, dx in ((0, 0), (0, 1), (1, 0), (1, 1)):
            cy = y0 + dy
            cx = x0 + dx
            wt = (ly if dy else 1.0 - ly) * (lx if dx else 1.0 - lx)
            valid = (cy >= 0) & (cy <= H - 1) & (cx >= 0) & (cx <= W - 1)
            wt = jnp.where(valid, wt, 0.0)
            idx = jnp.clip(cy.astype(jnp.int32) * W + cx.astype(jnp.int32), 0, L - 1)
            gathered = jnp.take_along_axis(val, idx[:, :, None], axis=1)
            samp = samp + wt[:, :, None] * gathered
        out = out + m[:, :, None] * samp
    return out


def ref_forward(x_nchw, P, *, shortcut=True):
    N, c1, H, W = x_nchw.shape
    c2 = P["pw_w"].shape[1]
    add = shortcut and (c1 == c2)
    L = H * W
    x = jnp.transpose(x_nchw, (0, 2, 3, 1))
    y = jax.lax.conv_general_dilated(x, P["cv1_w"], (1, 1), "SAME",
                                     dimension_numbers=("NHWC", "HWIO", "NHWC"))
    y = y * P["cv1_scale"][0] + P["cv1_shift"][0]
    y = y * jax.nn.sigmoid(y)
    y = jnp.einsum("nhwc,cd->nhwd", y, P["pw_w"])
    y = y * P["pw_scale"][0] + P["pw_shift"][0]
    y = y * jax.nn.sigmoid(y)
    yf = y.reshape(N, L, c2)
    val = yf @ P["vp_w"] + P["vp_b"][0]
    om = yf @ P["om_w"] + P["om_b"][0]
    core = _dcn_core_ref(val, om, H, W)
    out = core @ P["op_w"]
    out = out * P["out_scale"][0] + P["out_shift"][0]
    out = out * jax.nn.sigmoid(out)
    if add:
        out = out + x.reshape(N, L, c1)
    return jnp.transpose(out.reshape(N, H, W, c2), (0, 3, 1, 2))


# ----------------------------------------------------------------------------
if __name__ == "__main__":
    key = jax.random.PRNGKey(0)
    N, c1, c2, H, W = 2, 8, 8, 16, 16          # Bottleneck_DCNV4(c1=8, c2=8, e=0.5) -> c_=4
    kp, kx = jax.random.split(key)
    P = make_params(kp, c1, c2)
    x = jax.random.normal(kx, (N, c1, H, W), jnp.float32)

    out = jax.block_until_ready(bottleneck_dcnv4_forward(x, P, shortcut=True))
    assert out.shape == (N, c2, H, W) and out.dtype == jnp.float32

    with jax.default_matmul_precision("highest"):                   # f32 reference
        ref = jax.block_until_ready(ref_forward(x, P, shortcut=True))
    err = float(jnp.max(jnp.abs(out - ref)))
    scale = float(jnp.max(jnp.abs(ref)))
    # Pallas path runs bf16 MXU matmuls (f32 accumulation); tolerance reflects that.
    assert err <= 5e-2 * (scale + 1.0), f"max abs err {err} vs ref scale {scale}"

    # TODO(synk): training-mode BatchNorm (batch statistics) and group>1 DCNv4
    # (per-group offset layout) are not implemented; BN is inference-mode folded.
    print("KERNEL_OK")
</pallas_src>

<mosaic_0001>
module attributes {stable_mosaic.version = 11 : i64} {
  func.func @_pointwise_stack_kernel(%arg0: i32, %arg1: i32, %arg2: memref<1x128x72xbf16, #tpu.memory_space<vmem>>, %arg3: memref<72x4xbf16, #tpu.memory_space<vmem>>, %arg4: memref<1x4xf32, #tpu.memory_space<vmem>>, %arg5: memref<1x4xf32, #tpu.memory_space<vmem>>, %arg6: memref<4x8xbf16, #tpu.memory_space<vmem>>, %arg7: memref<1x8xf32, #tpu.memory_space<vmem>>, %arg8: memref<1x8xf32, #tpu.memory_space<vmem>>, %arg9: memref<8x8xbf16, #tpu.memory_space<vmem>>, %arg10: memref<1x8xf32, #tpu.memory_space<vmem>>, %arg11: memref<8x32xbf16, #tpu.memory_space<vmem>>, %arg12: memref<1x32xf32, #tpu.memory_space<vmem>>, %arg13: memref<1x128x8xbf16, #tpu.memory_space<vmem>>, %arg14: memref<1x128x32xf32, #tpu.memory_space<vmem>>) attributes {dimension_semantics = [#tpu.dimension_semantics<parallel>, #tpu.dimension_semantics<parallel>], iteration_bounds = array<i64: 2, 2>, scalar_prefetch = 0 : i64, scratch_operands = 0 : i64, tpu.core_type = #tpu.core_type<tc>, window_params = [{transform_indices = @transform_0, window_bounds = array<i64: 1, 128, 72>}, {pipeline_mode = #tpu.pipeline_mode<synchronous>, transform_indices = @transform_1, window_bounds = array<i64: 72, 4>}, {pipeline_mode = #tpu.pipeline_mode<synchronous>, transform_indices = @transform_2, window_bounds = array<i64: 1, 4>}, {pipeline_mode = #tpu.pipeline_mode<synchronous>, transform_indices = @transform_3, window_bounds = array<i64: 1, 4>}, {pipeline_mode = #tpu.pipeline_mode<synchronous>, transform_indices = @transform_4, window_bounds = array<i64: 4, 8>}, {pipeline_mode = #tpu.pipeline_mode<synchronous>, transform_indices = @transform_5, window_bounds = array<i64: 1, 8>}, {pipeline_mode = #tpu.pipeline_mode<synchronous>, transform_indices = @transform_6, window_bounds = array<i64: 1, 8>}, {pipeline_mode = #tpu.pipeline_mode<synchronous>, transform_indices = @transform_7, window_bounds = array<i64: 8, 8>}, {pipeline_mode = #tpu.pipeline_mode<synchronous>, transform_indices = @transform_8, window_bounds = array<i64: 1, 8>}, {pipeline_mode = #tpu.pipeline_mode<synchronous>, transform_indices = @transform_9, window_bounds = array<i64: 8, 32>}, {pipeline_mode = #tpu.pipeline_mode<synchronous>, transform_indices = @transform_10, window_bounds = array<i64: 1, 32>}, {transform_indices = @transform_11, window_bounds = array<i64: 1, 128, 8>}, {transform_indices = @transform_12, window_bounds = array<i64: 1, 128, 32>}]} {
    %c0 = arith.constant 0 : index
    %c0_0 = arith.constant 0 : index
    %c0_1 = arith.constant 0 : index
    %0 = vector.load %arg2[%c0, %c0_0, %c0_1] : memref<1x128x72xbf16, #tpu.memory_space<vmem>>, vector<1x128x72xbf16>
    %1 = vector.shape_cast %0 : vector<1x128x72xbf16> to vector<128x72xbf16>
    %c0_2 = arith.constant 0 : index
    %c0_3 = arith.constant 0 : index
    %2 = vector.load %arg3[%c0_2, %c0_3] : memref<72x4xbf16, #tpu.memory_space<vmem>>, vector<72x4xbf16>
    %cst = arith.constant dense<0.000000e+00> : vector<128x4xf32>
    %3 = tpu.matmul %1, %2, %cst {dimension_numbers = #tpu.dot_dimension_numbers<[1], [0], [0], [1], [0, 0, 1, 1], [], []>} : vector<128x72xbf16>, vector<72x4xbf16>, vector<128x4xf32> -> vector<128x4xf32>
    %c0_4 = arith.constant 0 : index
    %c0_5 = arith.constant 0 : index
    %4 = vector.load %arg4[%c0_4, %c0_5] : memref<1x4xf32, #tpu.memory_space<vmem>>, vector<1x4xf32>
    %5 = vector.broadcast %4 : vector<1x4xf32> to vector<128x4xf32>
    %6 = arith.mulf %3, %5 : vector<128x4xf32>
    %c0_6 = arith.constant 0 : index
    %c0_7 = arith.constant 0 : index
    %7 = vector.load %arg5[%c0_6, %c0_7] : memref<1x4xf32, #tpu.memory_space<vmem>>, vector<1x4xf32>
    %8 = vector.broadcast %7 : vector<1x4xf32> to vector<128x4xf32>
    %9 = arith.addf %6, %8 : vector<128x4xf32>
    %10 = arith.negf %9 : vector<128x4xf32>
    %11 = math.exp %10 : vector<128x4xf32>
    %cst_8 = arith.constant 1.000000e+00 : f32
    %12 = vector.broadcast %cst_8 : f32 to vector<128x4xf32>
    %13 = arith.addf %12, %11 : vector<128x4xf32>
    %14 = arith.divf %12, %13 : vector<128x4xf32>
    %15 = arith.mulf %9, %14 : vector<128x4xf32>
    %16 = arith.truncf %15 : vector<128x4xf32> to vector<128x4xbf16>
    %c0_9 = arith.constant 0 : index
    %c0_10 = arith.constant 0 : index
    %17 = vector.load %arg6[%c0_9, %c0_10] : memref<4x8xbf16, #tpu.memory_space<vmem>>, vector<4x8xbf16>
    %cst_11 = arith.constant dense<0.000000e+00> : vector<128x8xf32>
    %18 = tpu.matmul %16, %17, %cst_11 {dimension_numbers = #tpu.dot_dimension_numbers<[1], [0], [0], [1], [0, 0, 1, 1], [], []>} : vector<128x4xbf16>, vector<4x8xbf16>, vector<128x8xf32> -> vector<128x8xf32>
    %c0_12 = arith.constant 0 : index
    %c0_13 = arith.constant 0 : index
    %19 = vector.load %arg7[%c0_12, %c0_13] : memref<1x8xf32, #tpu.memory_space<vmem>>, vector<1x8xf32>
    %20 = vector.broadcast %19 : vector<1x8xf32> to vector<128x8xf32>
    %21 = arith.mulf %18, %20 : vector<128x8xf32>
    %c0_14 = arith.constant 0 : index
    %c0_15 = arith.constant 0 : index
    %22 = vector.load %arg8[%c0_14, %c0_15] : memref<1x8xf32, #tpu.memory_space<vmem>>, vector<1x8xf32>
    %23 = vector.broadcast %22 : vector<1x8xf32> to vector<128x8xf32>
    %24 = arith.addf %21, %23 : vector<128x8xf32>
    %25 = arith.negf %24 : vector<128x8xf32>
    %26 = math.exp %25 : vector<128x8xf32>
    %cst_16 = arith.constant 1.000000e+00 : f32
    %27 = vector.broadcast %cst_16 : f32 to vector<128x8xf32>
    %28 = arith.addf %27, %26 : vector<128x8xf32>
    %29 = arith.divf %27, %28 : vector<128x8xf32>
    %30 = arith.mulf %24, %29 : vector<128x8xf32>
    %31 = arith.truncf %30 : vector<128x8xf32> to vector<128x8xbf16>
    %c0_17 = arith.constant 0 : index
    %c0_18 = arith.constant 0 : index
    %32 = vector.load %arg9[%c0_17, %c0_18] : memref<8x8xbf16, #tpu.memory_space<vmem>>, vector<8x8xbf16>
    %cst_19 = arith.constant dense<0.000000e+00> : vector<128x8xf32>
    %33 = tpu.matmul %31, %32, %cst_19 {dimension_numbers = #tpu.dot_dimension_numbers<[1], [0], [0], [1], [0, 0, 1, 1], [], []>} : vector<128x8xbf16>, vector<8x8xbf16>, vector<128x8xf32> -> vector<128x8xf32>
    %c0_20 = arith.constant 0 : index
    %c0_21 = arith.constant 0 : index
    %34 = vector.load %arg10[%c0_20, %c0_21] : memref<1x8xf32, #tpu.memory_space<vmem>>, vector<1x8xf32>
    %35 = vector.broadcast %34 : vector<1x8xf32> to vector<128x8xf32>
    %36 = arith.addf %33, %35 : vector<128x8xf32>
    %c0_22 = arith.constant 0 : index
    %c0_23 = arith.constant 0 : index
    %37 = vector.load %arg11[%c0_22, %c0_23] : memref<8x32xbf16, #tpu.memory_space<vmem>>, vector<8x32xbf16>
    %cst_24 = arith.constant dense<0.000000e+00> : vector<128x32xf32>
    %38 = tpu.matmul %31, %37, %cst_24 {dimension_numbers = #tpu.dot_dimension_numbers<[1], [0], [0], [1], [0, 0, 1, 1], [], []>} : vector<128x8xbf16>, vector<8x32xbf16>, vector<128x32xf32> -> vector<128x32xf32>
    %c0_25 = arith.constant 0 : index
    %c0_26 = arith.constant 0 : index
    %39 = vector.load %arg12[%c0_25, %c0_26] : memref<1x32xf32, #tpu.memory_space<vmem>>, vector<1x32xf32>
    %40 = vector.broadcast %39 : vector<1x32xf32> to vector<128x32xf32>
    %41 = arith.addf %38, %40 : vector<128x32xf32>
    %42 = arith.truncf %36 : vector<128x8xf32> to vector<128x8xbf16>
    %c0_27 = arith.constant 0 : index
    %c0_28 = arith.constant 0 : index
    %c0_29 = arith.constant 0 : index
    %43 = vector.load %arg13[%c0_27, %c0_28, %c0_29] : memref<1x128x8xbf16, #tpu.memory_space<vmem>>, vector<1x128x8xbf16>
    %44 = vector.shape_cast %43 : vector<1x128x8xbf16> to vector<128x8xbf16>
    %45 = vector.shape_cast %42 : vector<128x8xbf16> to vector<1x128x8xbf16>
    tpu.vector_store %arg13[%c0_27, %c0_28, %c0_29], %45 {strides = array<i32>} : memref<1x128x8xbf16, #tpu.memory_space<vmem>>, vector<1x128x8xbf16>,
    %c0_30 = arith.constant 0 : index
    %c0_31 = arith.constant 0 : index
    %c0_32 = arith.constant 0 : index
    %46 = vector.load %arg14[%c0_30, %c0_31, %c0_32] : memref<1x128x32xf32, #tpu.memory_space<vmem>>, vector<1x128x32xf32>
    %47 = vector.shape_cast %46 : vector<1x128x32xf32> to vector<128x32xf32>
    %48 = vector.shape_cast %41 : vector<128x32xf32> to vector<1x128x32xf32>
    tpu.vector_store %arg14[%c0_30, %c0_31, %c0_32], %48 {strides = array<i32>} : memref<1x128x32xf32, #tpu.memory_space<vmem>>, vector<1x128x32xf32>,
    return
  }
  func.func @transform_0(%arg0: i32, %arg1: i32) -> (i32, i32, i32) {
    %c0_i32 = arith.constant 0 : i32
    %c0_i32_0 = arith.constant 0 : i32
    return %arg0, %arg1, %c0_i32 : i32, i32, i32
  }
  func.func @transform_1(%arg0: i32, %arg1: i32) -> (i32, i32) {
    %c0_i32 = arith.constant 0 : i32
    %c0_i32_0 = arith.constant 0 : i32
    %c0_i32_1 = arith.constant 0 : i32
    return %c0_i32, %c0_i32_0 : i32, i32
  }
  func.func @transform_2(%arg0: i32, %arg1: i32) -> (i32, i32) {
    %c0_i32 = arith.constant 0 : i32
    %c0_i32_0 = arith.constant 0 : i32
    %c0_i32_1 = arith.constant 0 : i32
    return %c0_i32, %c0_i32_0 : i32, i32
  }
  func.func @transform_3(%arg0: i32, %arg1: i32) -> (i32, i32) {
    %c0_i32 = arith.constant 0 : i32
    %c0_i32_0 = arith.constant 0 : i32
    %c0_i32_1 = arith.constant 0 : i32
    return %c0_i32, %c0_i32_0 : i32, i32
  }
  func.func @transform_4(%arg0: i32, %arg1: i32) -> (i32, i32) {
    %c0_i32 = arith.constant 0 : i32
    %c0_i32_0 = arith.constant 0 : i32
    %c0_i32_1 = arith.constant 0 : i32
    return %c0_i32, %c0_i32_0 : i32, i32
  }
  func.func @transform_5(%arg0: i32, %arg1: i32) -> (i32, i32) {
    %c0_i32 = arith.constant 0 : i32
    %c0_i32_0 = arith.constant 0 : i32
    %c0_i32_1 = arith.constant 0 : i32
    return %c0_i32, %c0_i32_0 : i32, i32
  }
  func.func @transform_6(%arg0: i32, %arg1: i32) -> (i32, i32) {
    %c0_i32 = arith.constant 0 : i32
    %c0_i32_0 = arith.constant 0 : i32
    %c0_i32_1 = arith.constant 0 : i32
    return %c0_i32, %c0_i32_0 : i32, i32
  }
  func.func @transform_7(%arg0: i32, %arg1: i32) -> (i32, i32) {
    %c0_i32 = arith.constant 0 : i32
    %c0_i32_0 = arith.constant 0 : i32
    %c0_i32_1 = arith.constant 0 : i32
    return %c0_i32, %c0_i32_0 : i32, i32
  }
  func.func @transform_8(%arg0: i32, %arg1: i32) -> (i32, i32) {
    %c0_i32 = arith.constant 0 : i32
    %c0_i32_0 = arith.constant 0 : i32
    %c0_i32_1 = arith.constant 0 : i32
    return %c0_i32, %c0_i32_0 : i32, i32
  }
  func.func @transform_9(%arg0: i32, %arg1: i32) -> (i32, i32) {
    %c0_i32 = arith.constant 0 : i32
    %c0_i32_0 = arith.constant 0 : i32
    %c0_i32_1 = arith.constant 0 : i32
    return %c0_i32, %c0_i32_0 : i32, i32
  }
  func.func @transform_10(%arg0: i32, %arg1: i32) -> (i32, i32) {
    %c0_i32 = arith.constant 0 : i32
    %c0_i32_0 = arith.constant 0 : i32
    %c0_i32_1 = arith.constant 0 : i32
    return %c0_i32, %c0_i32_0 : i32, i32
  }
  func.func @transform_11(%arg0: i32, %arg1: i32) -> (i32, i32, i32) {
    %c0_i32 = arith.constant 0 : i32
    %c0_i32_0 = arith.constant 0 : i32
    return %arg0, %arg1, %c0_i32 : i32, i32, i32
  }
  func.func @transform_12(%arg0: i32, %arg1: i32) -> (i32, i32, i32) {
    %c0_i32 = arith.constant 0 : i32
    %c0_i32_0 = arith.constant 0 : i32
    return %arg0, %arg1, %c0_i32 : i32, i32, i32
  }
}

</mosaic_0001>

<llo_original>
// kernel: tpu_custom_call.1
$region0: #{tpu_custom_call.1}
  #allocation0 [shape = 'u32[]', space=smem, size = 0x4, offset = 0x4, fixed_abs, tag = 'smem constant byte address 0x4 - core index']
  #allocation1 [shape = 'u32[144,128]{1,0:T(1,128)}', space=vmem, size = 0x12000, scoped, tag = 'internal scratch']
  %s0 = inlined_call_operand.vmem [shape: bf16[2,256,72], index: 0, kind: input, shape index: {}]
  %s1 = inlined_call_operand.vmem [shape: bf16[72,4], index: 1, kind: input, shape index: {}]
  %s2 = inlined_call_operand.vmem [shape: f32[1,4], index: 2, kind: input, shape index: {}]
  %s3 = inlined_call_operand.vmem [shape: f32[1,4], index: 3, kind: input, shape index: {}]
  %s4 = inlined_call_operand.vmem [shape: bf16[4,8], index: 4, kind: input, shape index: {}]
  %s5 = inlined_call_operand.vmem [shape: f32[1,8], index: 5, kind: input, shape index: {}]
  %s6 = inlined_call_operand.vmem [shape: f32[1,8], index: 6, kind: input, shape index: {}]
  %s7 = inlined_call_operand.vmem [shape: bf16[8,8], index: 7, kind: input, shape index: {}]
  %s8 = inlined_call_operand.vmem [shape: f32[1,8], index: 8, kind: input, shape index: {}]
  %s9 = inlined_call_operand.vmem [shape: bf16[8,32], index: 9, kind: input, shape index: {}]
  %s10 = inlined_call_operand.vmem [shape: f32[1,32], index: 10, kind: input, shape index: {}]
  %s11 = inlined_call_operand.vmem [shape: bf16[2,256,8], index: 11, kind: output, shape index: {0}]
  %s12 = inlined_call_operand.vmem [shape: f32[2,256,32], index: 12, kind: output, shape index: {1}]
  %13 = xla_tuple %s11, %s12
  %s14 = sld [smem:[#allocation0]]
  $region85: #{tpu_custom_call.1} parent=0
    _
  %s16 = ssub.s32 1, %s14
  %s17 = scalar_select 0, %s16, %s14
  loop: start=0, step=1, limit=6
  $region2: #{tpu_custom_call.1} parent=0 // loop_pre_header
    _
  $region3: #{tpu_custom_call.1} parent=0 // loop_header
    %s19 = sphi 0, %s23
    %p20 = scmp.ge.s32.totalorder %s19, 6
    %s26 = sphi 0, %s38
    %s27 = sphi 0, %s34
    %s28 = sphi 0, %s26
    %s29 = sphi 0, %s27
    %s30 = sphi 0, %s28
    %s31 = sphi 0, %s29
    %s43 = sphi 0, %s45
    %s46 = sphi 0, %s43
    %s47 = sphi 0, %s46
    %s63 = sphi 0, %s47
    %s67 = sphi 0, %s67
    %s69 = sphi 0, %s67
    %s70 = sphi 0, %s69
    %s84 = sphi 0, %s70
    %s88 = sphi 0, %s88
    %s90 = sphi 0, %s88
    %s91 = sphi 0, %s90
    %s105 = sphi 0, %s91
    %s109 = sphi 0, %s109
    %s111 = sphi 0, %s109
    %s112 = sphi 0, %s111
    %s126 = sphi 0, %s112
    %s130 = sphi 0, %s130
    %s132 = sphi 0, %s130
    %s133 = sphi 0, %s132
    %s147 = sphi 0, %s133
    %s151 = sphi 0, %s151
    %s153 = sphi 0, %s151
    %s154 = sphi 0, %s153
    %s168 = sphi 0, %s154
    %s172 = sphi 0, %s172
    %s174 = sphi 0, %s172
    %s175 = sphi 0, %s174
    %s189 = sphi 0, %s175
    %s193 = sphi 0, %s193
    %s195 = sphi 0, %s193
    %s196 = sphi 0, %s195
    %s210 = sphi 0, %s196
    %s214 = sphi 0, %s214
    %s216 = sphi 0, %s214
    %s217 = sphi 0, %s216
    %s231 = sphi 0, %s217
    %s235 = sphi 0, %s235
    %s237 = sphi 0, %s235
    %s238 = sphi 0, %s237
    %s252 = sphi 0, %s238
    %s256 = sphi 0, %s256
    %s258 = sphi 0, %s256
    %s259 = sphi 0, %s258
    %s273 = sphi 0, %s259
    %s281 = sphi 0, %s283
    %s284 = sphi 0, %s281
    %s285 = sphi 0, %s284
    %s301 = sphi 0, %s285
    %s309 = sphi 0, %s311
    %s312 = sphi 0, %s309
    %s313 = sphi 0, %s312
    %s329 = sphi 0, %s313
  $region4: #{tpu_custom_call.1} parent=0 // loop_header_branch
    %22 = sbr.rel (%p20) target = $region8
  $region5: #{tpu_custom_call.1} parent=0 // loop_body
    %s24 = ssub.s32 %s19, 1
    %s25 = ssub.s32 %s19, 2
    %s32 = sadd.s32 1, %s27
    %p33 = scmp.ge.s32.totalorder %s32, 2
    %s34 = scalar_select %p33, 0, %s32
    %s35 = sadd.s32 1, %s26
    %s36 = scalar_select %p33, %s35, %s26
    %p37 = scmp.ge.s32.totalorder %s36, 2
    %s38 = scalar_select %p37, 0, %s36
    %s39 = ssub.s32 %s26, %s38
    %s40 = ssub.s32 %s27, %s34
    %s41 = sor.u32 %s39, %s40
    %p42 = scmp.eq.s32.totalorder %s41, 0
    %s44 = sadd.s32 %s43, 1
    %s45 = scalar_select %p42, %s43, %s44
    %p48 = pneg %p42
    %p49 = scmp.eq.s32.totalorder %s19, 3
    %p50 = por %p48, %p49
    %p51 = scmp.ne.s32.totalorder %s43, %s46
    %p52 = scmp.eq.s32.totalorder %s19, 0
    %p53 = por %p51, %p52
    %p54 = scmp.ne.s32.totalorder %s43, %s46
    %p55 = scmp.eq.s32.totalorder %s24, 3
    %p56 = por %p54, %p55
    %p57 = scmp.ne.s32.totalorder %s46, %s47
    %p58 = scmp.eq.s32.totalorder %s24, 0
    %p59 = por %p57, %p58
    %p60 = scmp.ne.s32.totalorder %s46, %s47
    %p61 = scmp.eq.s32.totalorder %s25, 3
    %p62 = por %p60, %p61
    %p64 = scmp.ne.s32.totalorder %s47, %s63
    %p65 = scmp.eq.s32.totalorder %s25, 0
    %p66 = por %p64, %p65
    %s68 = sadd.s32 %s67, 1
    %p71 = scmp.eq.s32.totalorder %s19, 3
    %p72 = scmp.ne.s32.totalorder %s67, %s69
    %p73 = scmp.eq.s32.totalorder %s19, 0
    %p74 = por %p72, %p73
    %p75 = scmp.ne.s32.totalorder %s67, %s69
    %p76 = scmp.eq.s32.totalorder %s24, 3
    %p77 = por %p75, %p76
    %p78 = scmp.ne.s32.totalorder %s69, %s70
    %p79 = scmp.eq.s32.totalorder %s24, 0
    %p80 = por %p78, %p79
    %p81 = scmp.ne.s32.totalorder %s69, %s70
    %p82 = scmp.eq.s32.totalorder %s25, 3
    %p83 = por %p81, %p82
    %p85 = scmp.ne.s32.totalorder %s70, %s84
    %p86 = scmp.eq.s32.totalorder %s25, 0
    %p87 = por %p85, %p86
    %s89 = sadd.s32 %s88, 1
    %p92 = scmp.eq.s32.totalorder %s19, 3
    %p93 = scmp.ne.s32.totalorder %s88, %s90
    %p94 = scmp.eq.s32.totalorder %s19, 0
    %p95 = por %p93, %p94
    %p96 = scmp.ne.s32.totalorder %s88, %s90
    %p97 = scmp.eq.s32.totalorder %s24, 3
    %p98 = por %p96, %p97
    %p99 = scmp.ne.s32.totalorder %s90, %s91
    %p100 = scmp.eq.s32.totalorder %s24, 0
    %p101 = por %p99, %p100
    %p102 = scmp.ne.s32.totalorder %s90, %s91
    %p103 = scmp.eq.s32.totalorder %s25, 3
    %p104 = por %p102, %p103
    %p106 = scmp.ne.s32.totalorder %s91, %s105
    %p107 = scmp.eq.s32.totalorder %s25, 0
    %p108 = por %p106, %p107
    %s110 = sadd.s32 %s109, 1
    %p113 = scmp.eq.s32.totalorder %s19, 3
    %p114 = scmp.ne.s32.totalorder %s109, %s111
    %p115 = scmp.eq.s32.totalorder %s19, 0
    %p116 = por %p114, %p115
    %p117 = scmp.ne.s32.totalorder %s109, %s111
    %p118 = scmp.eq.s32.totalorder %s24, 3
    %p119 = por %p117, %p118
    %p120 = scmp.ne.s32.totalorder %s111, %s112
    %p121 = scmp.eq.s32.totalorder %s24, 0
    %p122 = por %p120, %p121
    %p123 = scmp.ne.s32.totalorder %s111, %s112
    %p124 = scmp.eq.s32.totalorder %s25, 3
    %p125 = por %p123, %p124
    %p127 = scmp.ne.s32.totalorder %s112, %s126
    %p128 = scmp.eq.s32.totalorder %s25, 0
    %p129 = por %p127, %p128
    %s131 = sadd.s32 %s130, 1
    %p134 = scmp.eq.s32.totalorder %s19, 3
    %p135 = scmp.ne.s32.totalorder %s130, %s132
    %p136 = scmp.eq.s32.totalorder %s19, 0
    %p137 = por %p135, %p136
    %p138 = scmp.ne.s32.totalorder %s130, %s132
    %p139 = scmp.eq.s32.totalorder %s24, 3
    %p140 = por %p138, %p139
    %p141 = scmp.ne.s32.totalorder %s132, %s133
    %p142 = scmp.eq.s32.totalorder %s24, 0
    %p143 = por %p141, %p142
    %p144 = scmp.ne.s32.totalorder %s132, %s133
    %p145 = scmp.eq.s32.totalorder %s25, 3
    %p146 = por %p144, %p145
    %p148 = scmp.ne.s32.totalorder %s133, %s147
    %p149 = scmp.eq.s32.totalorder %s25, 0
    %p150 = por %p148, %p149
    %s152 = sadd.s32 %s151, 1
    %p155 = scmp.eq.s32.totalorder %s19, 3
    %p156 = scmp.ne.s32.totalorder %s151, %s153
    %p157 = scmp.eq.s32.totalorder %s19, 0
    %p158 = por %p156, %p157
    %p159 = scmp.ne.s32.totalorder %s151, %s153
    %p160 = scmp.eq.s32.totalorder %s24, 3
    %p161 = por %p159, %p160
    %p162 = scmp.ne.s32.totalorder %s153, %s154
    %p163 = scmp.eq.s32.totalorder %s24, 0
    %p164 = por %p162, %p163
    %p165 = scmp.ne.s32.totalorder %s153, %s154
    %p166 = scmp.eq.s32.totalorder %s25, 3
    %p167 = por %p165, %p166
    %p169 = scmp.ne.s32.totalorder %s154, %s168
    %p170 = scmp.eq.s32.totalorder %s25, 0
    %p171 = por %p169, %p170
    %s173 = sadd.s32 %s172, 1
    %p176 = scmp.eq.s32.totalorder %s19, 3
    %p177 = scmp.ne.s32.totalorder %s172, %s174
    %p178 = scmp.eq.s32.totalorder %s19, 0
    %p179 = por %p177, %p178
    %p180 = scmp.ne.s32.totalorder %s172, %s174
    %p181 = scmp.eq.s32.totalorder %s24, 3
    %p182 = por %p180, %p181
    %p183 = scmp.ne.s32.totalorder %s174, %s175
    %p184 = scmp.eq.s32.totalorder %s24, 0
    %p185 = por %p183, %p184
    %p186 = scmp.ne.s32.totalorder %s174, %s175
    %p187 = scmp.eq.s32.totalorder %s25, 3
    %p188 = por %p186, %p187
    %p190 = scmp.ne.s32.totalorder %s175, %s189
    %p191 = scmp.eq.s32.totalorder %s25, 0
    %p192 = por %p190, %p191
    %s194 = sadd.s32 %s193, 1
    %p197 = scmp.eq.s32.totalorder %s19, 3
    %p198 = scmp.ne.s32.totalorder %s193, %s195
    %p199 = scmp.eq.s32.totalorder %s19, 0
    %p200 = por %p198, %p199
    %p201 = scmp.ne.s32.totalorder %s193, %s195
    %p202 = scmp.eq.s32.totalorder %s24, 3
    %p203 = por %p201, %p202
    %p204 = scmp.ne.s32.totalorder %s195, %s196
    %p205 = scmp.eq.s32.totalorder %s24, 0
    %p206 = por %p204, %p205
    %p207 = scmp.ne.s32.totalorder %s195, %s196
    %p208 = scmp.eq.s32.totalorder %s25, 3
    %p209 = por %p207, %p208
    %p211 = scmp.ne.s32.totalorder %s196, %s210
    %p212 = scmp.eq.s32.totalorder %s25, 0
    %p213 = por %p211, %p212
    %s215 = sadd.s32 %s214, 1
    %p218 = scmp.eq.s32.totalorder %s19, 3
    %p219 = scmp.ne.s32.totalorder %s214, %s216
    %p220 = scmp.eq.s32.totalorder %s19, 0
    %p221 = por %p219, %p220
    %p222 = scmp.ne.s32.totalorder %s214, %s216
    %p223 = scmp.eq.s32.totalorder %s24, 3
    %p224 = por %p222, %p223
    %p225 = scmp.ne.s32.totalorder %s216, %s217
    %p226 = scmp.eq.s32.totalorder %s24, 0
    %p227 = por %p225, %p226
    %p228 = scmp.ne.s32.totalorder %s216, %s217
    %p229 = scmp.eq.s32.totalorder %s25, 3
    %p230 = por %p228, %p229
    %p232 = scmp.ne.s32.totalorder %s217, %s231
    %p233 = scmp.eq.s32.totalorder %s25, 0
    %p234 = por %p232, %p233
    %s236 = sadd.s32 %s235, 1
    %p239 = scmp.eq.s32.totalorder %s19, 3
    %p240 = scmp.ne.s32.totalorder %s235, %s237
    %p241 = scmp.eq.s32.totalorder %s19, 0
    %p242 = por %p240, %p241
    %p243 = scmp.ne.s32.totalorder %s235, %s237
    %p244 = scmp.eq.s32.totalorder %s24, 3
    %p245 = por %p243, %p244
    %p246 = scmp.ne.s32.totalorder %s237, %s238
    %p247 = scmp.eq.s32.totalorder %s24, 0
    %p248 = por %p246, %p247
    %p249 = scmp.ne.s32.totalorder %s237, %s238
    %p250 = scmp.eq.s32.totalorder %s25, 3
    %p251 = por %p249, %p250
    %p253 = scmp.ne.s32.totalorder %s238, %s252
    %p254 = scmp.eq.s32.totalorder %s25, 0
    %p255 = por %p253, %p254
    %s257 = sadd.s32 %s256, 1
    %p260 = scmp.eq.s32.totalorder %s19, 3
    %p261 = scmp.ne.s32.totalorder %s256, %s258
    %p262 = scmp.eq.s32.totalorder %s19, 0
    %p263 = por %p261, %p262
    %p264 = scmp.ne.s32.totalorder %s256, %s258
    %p265 = scmp.eq.s32.totalorder %s24, 3
    %p266 = por %p264, %p265
    %p267 = scmp.ne.s32.totalorder %s258, %s259
    %p268 = scmp.eq.s32.totalorder %s24, 0
    %p269 = por %p267, %p268
    %p270 = scmp.ne.s32.totalorder %s258, %s259
    %p271 = scmp.eq.s32.totalorder %s25, 3
    %p272 = por %p270, %p271
    %p274 = scmp.ne.s32.totalorder %s259, %s273
    %p275 = scmp.eq.s32.totalorder %s25, 0
    %p276 = por %p274, %p275
    %s277 = ssub.s32 %s26, %s38
    %s278 = ssub.s32 %s27, %s34
    %s279 = sor.u32 %s277, %s278
    %p280 = scmp.eq.s32.totalorder %s279, 0
    %s282 = sadd.s32 %s281, 1
    %s283 = scalar_select %p280, %s281, %s282
    %p286 = pneg %p280
    %p287 = scmp.eq.s32.totalorder %s19, 3
    %p288 = por %p286, %p287
    %p289 = scmp.ne.s32.totalorder %s281, %s284
    %p290 = scmp.eq.s32.totalorder %s19, 0
    %p291 = por %p289, %p290
    %p292 = scmp.ne.s32.totalorder %s281, %s284
    %p293 = scmp.eq.s32.totalorder %s24, 3
    %p294 = por %p292, %p293
    %p295 = scmp.ne.s32.totalorder %s284, %s285
    %p296 = scmp.eq.s32.totalorder %s24, 0
    %p297 = por %p295, %p296
    %p298 = scmp.ne.s32.totalorder %s284, %s285
    %p299 = scmp.eq.s32.totalorder %s25, 3
    %p300 = por %p298, %p299
    %p302 = scmp.ne.s32.totalorder %s285, %s301
    %p303 = scmp.eq.s32.totalorder %s25, 0
    %p304 = por %p302, %p303
    %s305 = ssub.s32 %s26, %s38
    %s306 = ssub.s32 %s27, %s34
    %s307 = sor.u32 %s305, %s306
    %p308 = scmp.eq.s32.totalorder %s307, 0
    %s310 = sadd.s32 %s309, 1
    %s311 = scalar_select %p308, %s309, %s310
    %p314 = pneg %p308
    %p315 = scmp.eq.s32.totalorder %s19, 3
    %p316 = por %p314, %p315
    %p317 = scmp.ne.s32.totalorder %s309, %s312
    %p318 = scmp.eq.s32.totalorder %s19, 0
    %p319 = por %p317, %p318
    %p320 = scmp.ne.s32.totalorder %s309, %s312
    %p321 = scmp.eq.s32.totalorder %s24, 3
    %p322 = por %p320, %p321
    %p323 = scmp.ne.s32.totalorder %s312, %s313
    %p324 = scmp.eq.s32.totalorder %s24, 0
    %p325 = por %p323, %p324
    %p326 = scmp.ne.s32.totalorder %s312, %s313
    %p327 = scmp.eq.s32.totalorder %s25, 3
    %p328 = por %p326, %p327
    %p330 = scmp.ne.s32.totalorder %s313, %s329
    %p331 = scmp.eq.s32.totalorder %s25, 0
    %p332 = por %p330, %p331
    %p333 = scmp.le.s32.totalorder 1, %s19
    %p334 = scmp.lt.s32.totalorder %s19, 5
    %p335 = pnand %p333, %p334
    %p336 = pneg %p335
    // Predicated region
    $region9: #{tpu_custom_call.1} parent=5 // pred_check
      _
    $region10: #{tpu_custom_call.1} parent=5 // pred_check_branch
      %338 = sbr.rel (%p335) target = $region12
    $region11: #{tpu_custom_call.1} parent=5 // pred_region
      %s339 = ssub.s32 %s19, 1
      // Predicated region
      $region13: #{tpu_custom_call.1} parent=11 // pred_check
        %p340 = pneg %p80
      $region14: #{tpu_custom_call.1} parent=11 // pred_check_branch
        %342 = sbr.rel (%p340) target = $region16
      $region15: #{tpu_custom_call.1} parent=11 // pred_region
        _
      $region16: #{tpu_custom_call.1} parent=11 // pred_fallthru
        _
      // Predicated region
      $region17: #{tpu_custom_call.1} parent=11 // pred_check
        %p343 = pneg %p101
      $region18: #{tpu_custom_call.1} parent=11 // pred_check_branch
        %345 = sbr.rel (%p343) target = $region20
      $region19: #{tpu_custom_call.1} parent=11 // pred_region
        _
      $region20: #{tpu_custom_call.1} parent=11 // pred_fallthru
        _
      // Predicated region
      $region21: #{tpu_custom_call.1} parent=11 // pred_check
        %p346 = pneg %p122
      $region22: #{tpu_custom_call.1} parent=11 // pred_check_branch
        %348 = sbr.rel (%p346) target = $region24
      $region23: #{tpu_custom_call.1} parent=11 // pred_region
        _
      $region24: #{tpu_custom_call.1} parent=11 // pred_fallthru
        _
      // Predicated region
      $region25: #{tpu_custom_call.1} parent=11 // pred_check
        %p349 = pneg %p143
      $region26: #{tpu_custom_call.1} parent=11 // pred_check_branch
        %351 = sbr.rel (%p349) target = $region28
      $region27: #{tpu_custom_call.1} parent=11 // pred_region
        _
      $region28: #{tpu_custom_call.1} parent=11 // pred_fallthru
        _
      // Predicated region
      $region29: #{tpu_custom_call.1} parent=11 // pred_check
        %p352 = pneg %p164
      $region30: #{tpu_custom_call.1} parent=11 // pred_check_branch
        %354 = sbr.rel (%p352) target = $region32
      $region31: #{tpu_custom_call.1} parent=11 // pred_region
        _
      $region32: #{tpu_custom_call.1} parent=11 // pred_fallthru
        _
      // Predicated region
      $region33: #{tpu_custom_call.1} parent=11 // pred_check
        %p355 = pneg %p185
      $region34: #{tpu_custom_call.1} parent=11 // pred_check_branch
        %357 = sbr.rel (%p355) target = $region36
      $region35: #{tpu_custom_call.1} parent=11 // pred_region
        _
      $region36: #{tpu_custom_call.1} parent=11 // pred_fallthru
        _
      // Predicated region
      $region37: #{tpu_custom_call.1} parent=11 // pred_check
        %p358 = pneg %p206
      $region38: #{tpu_custom_call.1} parent=11 // pred_check_branch
        %360 = sbr.rel (%p358) target = $region40
      $region39: #{tpu_custom_call.1} parent=11 // pred_region
        _
      $region40: #{tpu_custom_call.1} parent=11 // pred_fallthru
        _
      // Predicated region
      $region41: #{tpu_custom_call.1} parent=11 // pred_check
        %p361 = pneg %p227
      $region42: #{tpu_custom_call.1} parent=11 // pred_check_branch
        %363 = sbr.rel (%p361) target = $region44
      $region43: #{tpu_custom_call.1} parent=11 // pred_region
        _
      $region44: #{tpu_custom_call.1} parent=11 // pred_fallthru
        _
      // Predicated region
      $region45: #{tpu_custom_call.1} parent=11 // pred_check
        %p364 = pneg %p248
      $region46: #{tpu_custom_call.1} parent=11 // pred_check_branch
        %366 = sbr.rel (%p364) target = $region48
      $region47: #{tpu_custom_call.1} parent=11 // pred_region
        _
      $region48: #{tpu_custom_call.1} parent=11 // pred_fallthru
        _
      // Predicated region
      $region49: #{tpu_custom_call.1} parent=11 // pred_check
        %p367 = pneg %p269
      $region50: #{tpu_custom_call.1} parent=11 // pred_check_branch
        %369 = sbr.rel (%p367) target = $region52
      $region51: #{tpu_custom_call.1} parent=11 // pred_region
        _
      $region52: #{tpu_custom_call.1} parent=11 // pred_fallthru
        _
    $region12: #{tpu_custom_call.1} parent=5 // pred_fallthru
      _
    %p370 = scmp.lt.s32.totalorder %s19, 4
    // Predicated region
    $region53: #{tpu_custom_call.1} parent=5 // pred_check
      %p371 = pneg %p370
    $region54: #{tpu_custom_call.1} parent=5 // pred_check_branch
      %373 = sbr.rel (%p371) target = $region56
    $region55: #{tpu_custom_call.1} parent=5 // pred_region
      // Predicated region
      $region57: #{tpu_custom_call.1} parent=55 // pred_check
        %p374 = pneg %p53
      $region58: #{tpu_custom_call.1} parent=55 // pred_check_branch
        %376 = sbr.rel (%p374) target = $region60
      $region59: #{tpu_custom_call.1} parent=55 // pred_region
        %s377 = smul.u32 16, %s27
        %p378 = scmp.lt.s32.totalorder %s26, 1
        %s379 = scalar_select %p378, %s26, 1
        %p380 = scmp.lt.s32.totalorder %s377, 31
        %s381 = scalar_select %p380, %s377, 31
        %s382 = smul.addr %s379, 32
        %s383 = sadd.s32 %s381, %s382
        %s384 = smul.addr %s383, 4
        %s385 = scalar_lea.vmem %s0, %s384
        %s386 = smul.u32 16, %s27
      $region60: #{tpu_custom_call.1} parent=55 // pred_fallthru
        _
    $region56: #{tpu_custom_call.1} parent=5 // pred_fallthru
      _
    %p387 = scmp.le.s32.totalorder 1, %s19
    %p388 = scmp.lt.s32.totalorder %s19, 5
    %p389 = pnand %p387, %p388
    %p390 = pneg %p389
    // Predicated region
    $region61: #{tpu_custom_call.1} parent=5 // pred_check
      _
    $region62: #{tpu_custom_call.1} parent=5 // pred_check_branch
      %392 = sbr.rel (%p389) target = $region64
    $region63: #{tpu_custom_call.1} parent=5 // pred_region
      %s393 = ssub.s32 %s19, 1
      %s394 = smul.u32 16, %s29
      %p395 = scmp.lt.s32.totalorder %s28, 1
      %s396 = scalar_select %p395, %s28, 1
      %p397 = scmp.lt.s32.totalorder %s394, 31
      %s398 = scalar_select %p397, %s394, 31
      %s399 = smul.addr %s396, 32
      %s400 = sadd.s32 %s398, %s399
      %s401 = smul.addr %s400, 4
      %s402 = scalar_lea.vmem %s0, %s401
      %p403 = pneg %p59
      %p404 = pneg %p56
      %p405 = pneg %p80
      %p406 = pneg %p77
      %p407 = pneg %p101
      %p408 = pneg %p98
      %p409 = pneg %p122
      %p410 = pneg %p119
      %p411 = pneg %p143
      %p412 = pneg %p140
      %p413 = pneg %p164
      %p414 = pneg %p161
      %p415 = pneg %p185
      %p416 = pneg %p182
      %p417 = pneg %p206
      %p418 = pneg %p203
      %p419 = pneg %p227
      %p420 = pneg %p224
      %p421 = pneg %p248
      %p422 = pneg %p245
      %p423 = pneg %p269
      %p424 = pneg %p266
      %p425 = pneg %p297
      %p426 = pneg %p294
      %s427 = smul.u32 16, %s29
      %p428 = scmp.lt.s32.totalorder %s28, 1
      %s429 = scalar_select %p428, %s28, 1
      %p430 = scmp.lt.s32.totalorder %s427, 31
      %s431 = scalar_select %p430, %s427, 31
      %s432 = smul.addr %s429, 32
      %s433 = sadd.s32 %s431, %s432
      %s434 = smul.addr %s433, 4
      %s435 = scalar_lea.vmem %s11, %s434
      %p436 = pneg %p325
      %p437 = pneg %p322
      %s438 = smul.u32 16, %s29
      %p439 = scmp.lt.s32.totalorder %s28, 1
      %s440 = scalar_select %p439, %s28, 1
      %p441 = scmp.lt.s32.totalorder %s438, 31
      %s442 = scalar_select %p441, %s438, 31
      %s443 = smul.addr %s440, 32
      %s444 = sadd.s32 %s442, %s443
      %s445 = smul.addr %s444, 8
      %s446 = scalar_lea.vmem %s12, %s445
      %s447 = smul.u32 16, %s29
      %p448 = scmp.lt.s32.totalorder %s28, 1
      %s449 = scalar_select %p448, %s28, 1
      %p450 = scmp.lt.s32.totalorder %s447, 31
      %s451 = scalar_select %p450, %s447, 31
      %s452 = smul.addr %s449, 32
      %s453 = sadd.s32 %s451, %s452
      %s454 = smul.addr %s453, 4
      %s455 = scalar_lea.vmem %s0, %s454
      %s456 = smul.u32 16, %s29
      %s457 = smul.u32 16, %s29
      %p458 = scmp.lt.s32.totalorder %s28, 1
      %s459 = scalar_select %p458, %s28, 1
      %p460 = scmp.lt.s32.totalorder %s457, 31
      %s461 = scalar_select %p460, %s457, 31
      %s462 = smul.addr %s459, 32
      %s463 = sadd.s32 %s461, %s462
      %s464 = smul.addr %s463, 4
      %s465 = scalar_lea.vmem %s11, %s464
      %s466 = smul.u32 16, %s29
      %s467 = smul.u32 16, %s29
      %p468 = scmp.lt.s32.totalorder %s28, 1
      %s469 = scalar_select %p468, %s28, 1
      %p470 = scmp.lt.s32.totalorder %s467, 31
      %s471 = scalar_select %p470, %s467, 31
      %s472 = smul.addr %s469, 32
      %s473 = sadd.s32 %s471, %s472
      %s474 = smul.addr %s473, 8
      %s475 = scalar_lea.vmem %s12, %s474
      %s476 = smul.u32 16, %s29
      %v478 = vld [vmem:[%s455] sm:$0xf]
      %v479 = vld [vmem:[%s455 + $0x4] sm:$0xf]
      %v480 = vld [vmem:[%s455 + $0x8] sm:$0xf]
      %v481 = vld [vmem:[%s455 + $0xc] sm:$0xf]
      %v482 = vld [vmem:[%s455 + $0x10] sm:$0xf]
      %v483 = vld [vmem:[%s455 + $0x14] sm:$0xf]
      %v484 = vld [vmem:[%s455 + $0x18] sm:$0xf]
      %v485 = vld [vmem:[%s455 + $0x1c] sm:$0xf]
      %v486 = vld [vmem:[%s455 + $0x20] sm:$0xf]
      %v487 = vld [vmem:[%s455 + $0x24] sm:$0xf]
      %v488 = vld [vmem:[%s455 + $0x28] sm:$0xf]
      %v489 = vld [vmem:[%s455 + $0x2c] sm:$0xf]
      %v490 = vld [vmem:[%s455 + $0x30] sm:$0xf]
      %v491 = vld [vmem:[%s455 + $0x34] sm:$0xf]
      %v492 = vld [vmem:[%s455 + $0x38] sm:$0xf]
      %v493 = vld [vmem:[%s455 + $0x3c] sm:$0xf]
      %v494 = vld [vmem:[%s1] sm:$0xf]
      %v495 = vld [vmem:[%s1 + $0x4] sm:$0xf]
      %v496 = vld [vmem:[%s1 + $0x8] sm:$0xf]
      %v497 = vld [vmem:[%s1 + $0xc] sm:$0xf]
      %v498 = vld [vmem:[%s1 + $0x10] sm:$0xf]
      %v499 = vld [vmem:[%s1 + $0x14] sm:$0xf]
      %v500 = vld [vmem:[%s1 + $0x18] sm:$0xf]
      %v501 = vld [vmem:[%s1 + $0x1c] sm:$0xf]
      %v502 = vld [vmem:[%s1 + $0x20] sm:$0xf]
      %v519 = vunpack.c.l.b16 %v478
      %v520 = vunpack.c.l.b16 %v479
      %v521 = vunpack.c.l.b16 %v480
      %v522 = vunpack.c.l.b16 %v481
      %v523 = vunpack.c.l.b16 %v482
      %v524 = vunpack.c.l.b16 %v483
      %v525 = vunpack.c.l.b16 %v484
      %v526 = vunpack.c.l.b16 %v485
      %v527 = vunpack.c.l.b16 %v486
      %v528 = vunpack.c.l.b16 %v487
      %v529 = vunpack.c.l.b16 %v488
      %v530 = vunpack.c.l.b16 %v489
      %v531 = vunpack.c.l.b16 %v490
      %v532 = vunpack.c.l.b16 %v491
      %v533 = vunpack.c.l.b16 %v492
      %v534 = vunpack.c.l.b16 %v493
      %v535 = vpack.c.b16 %v520, %v519
      %v536 = vpack.c.b16 %v522, %v521
      %v537 = vpack.c.b16 %v524, %v523
      %v538 = vpack.c.b16 %v526, %v525
      %v539 = vpack.c.b16 %v528, %v527
      %v540 = vpack.c.b16 %v530, %v529
      %v541 = vpack.c.b16 %v532, %v531
      %v542 = vpack.c.b16 %v534, %v533
      %v552 = vunpack.c.l.b16 %v494
      %v553 = vunpack.c.l.b16 %v495
      %v554 = vunpack.c.l.b16 %v496
      %v555 = vunpack.c.l.b16 %v497
      %v556 = vunpack.c.l.b16 %v498
      %v557 = vunpack.c.l.b16 %v499
      %v558 = vunpack.c.l.b16 %v500
      %v559 = vunpack.c.l.b16 %v501
      %v560 = vunpack.c.l.b16 %v502
      %v561 = vpack.c.b16 %v553, %v552
      %v562 = vpack.c.b16 %v555, %v554
      %v563 = vpack.c.b16 %v557, %v556
      %v564 = vpack.c.b16 %v559, %v558
      %v565 = vpack.c.b16 %v560, %v560
      %vm570 = vcmask 588800
      %v572 = vsel %vm570, %v535, 0
      %v575 = vsel %vm570, %v536, 0
      %v578 = vsel %vm570, %v537, 0
      %v581 = vsel %vm570, %v538, 0
      %v584 = vsel %vm570, %v539, 0
      %v587 = vsel %vm570, %v540, 0
      %v590 = vsel %vm570, %v541, 0
      %v593 = vsel %vm570, %v542, 0
      %vm595 = vcmask 1043456
      %v597 = vsel %vm595, %v565, 0
      %599 = vmatprep.subr.bf16.mxu0 0
      %600 = vmatpush1.bf16.msra.mxu0 %v561
      %601 = vmatprep.subr.bf16.mxu0 0
      %602 = vmatpush1.bf16.msra.mxu0 %v562
      %603 = vmatprep.subr.bf16.mxu0 0
      %604 = vmatpush1.bf16.msra.mxu0 %v563
      %605 = vmatprep.subr.bf16.mxu0 0
      %606 = vmatpush1.bf16.msra.mxu0 %v564
      %607 = vmatprep.subr.bf16.mxu0 0
      %608 = vmatpush1.bf16.msra.mxu0 %v597
      %609 = vmatprep.subr.bf16.mxu0 0
      %610 = vmatpush1.bf16.msra.mxu0 0
      %611 = vmatprep.subr.bf16.mxu0 0
      %612 = vmatpush1.bf16.msra.mxu0 0
      %613 = vmatprep.subr.bf16.mxu0 0
      %614 = vmatpush1.bf16.msra.mxu0 0
      %615 = vmatprep.subr.bf16.mxu0 0
      %616 = vmatpush1.bf16.msra.mxu0 0
      %617 = vmatprep.subr.bf16.mxu0 0
      %618 = vmatpush1.bf16.msra.mxu0 0
      %619 = vmatprep.subr.bf16.mxu0 0
      %620 = vmatpush1.bf16.msra.mxu0 0
      %621 = vmatprep.subr.bf16.mxu0 0
      %622 = vmatpush1.bf16.msra.mxu0 0
      %623 = vmatprep.subr.bf16.mxu0 0
      %624 = vmatpush1.bf16.msra.mxu0 0
      %625 = vmatprep.subr.bf16.mxu0 0
      %626 = vmatpush1.bf16.msra.mxu0 0
      %627 = vmatprep.subr.bf16.mxu0 0
      %628 = vmatpush1.bf16.msra.mxu0 0
      %629 = vmatprep.subr.bf16.mxu0 0
      %630 = vmatpush1.bf16.msra.mxu0 0
      %631 = vmatprep.mubr.bf16.mxu0 0
      %632 = vmatmul.mubr.bf16.gmra.mrb[0].mxu0 %v572
      %v633 = vpop.f32.mrb[0].mxu0
      %v634 = vadd.f32 0.0, %v633
      %v635 = vpop.f32.mrb[0].mxu0
      %v636 = vpop.f32.mrb[0].mxu0
      %v637 = vadd.f32 0.0, %v636
      %v638 = vpop.f32.mrb[0].mxu0
      %639 = vmatprep.mubr.bf16.mxu0 0
      %640 = vmatmul.mubr.bf16.gmra.mrb[0].mxu0 %v575
      %v641 = vpop.f32.mrb[0].mxu0
      %v642 = vadd.f32 0.0, %v641
      %v643 = vpop.f32.mrb[0].mxu0
      %v644 = vpop.f32.mrb[0].mxu0
      %v645 = vadd.f32 0.0, %v644
      %v646 = vpop.f32.mrb[0].mxu0
      %647 = vmatprep.mubr.bf16.mxu0 0
      %648 = vmatmul.mubr.bf16.gmra.mrb[0].mxu0 %v578
      %v649 = vpop.f32.mrb[0].mxu0
      %v650 = vadd.f32 0.0, %v649
      %v651 = vpop.f32.mrb[0].mxu0
      %v652 = vpop.f32.mrb[0].mxu0
      %v653 = vadd.f32 0.0, %v652
      %v654 = vpop.f32.mrb[0].mxu0
      %655 = vmatprep.mubr.bf16.mxu0 0
      %656 = vmatmul.mubr.bf16.gmra.mrb[0].mxu0 %v581
      %v657 = vpop.f32.mrb[0].mxu0
      %v658 = vadd.f32 0.0, %v657
      %v659 = vpop.f32.mrb[0].mxu0
      %v660 = vpop.f32.mrb[0].mxu0
      %v661 = vadd.f32 0.0, %v660
      %v662 = vpop.f32.mrb[0].mxu0
      %663 = vmatprep.mubr.bf16.mxu0 0
      %664 = vmatmul.mubr.bf16.gmra.mrb[0].mxu0 %v584
      %v665 = vpop.f32.mrb[0].mxu0
      %v666 = vadd.f32 0.0, %v665
      %v667 = vpop.f32.mrb[0].mxu0
      %v668 = vpop.f32.mrb[0].mxu0
      %v669 = vadd.f32 0.0, %v668
      %v670 = vpop.f32.mrb[0].mxu0
      %671 = vmatprep.mubr.bf16.mxu0 0
      %672 = vmatmul.mubr.bf16.gmra.mrb[0].mxu0 %v587
      %v673 = vpop.f32.mrb[0].mxu0
      %v674 = vadd.f32 0.0, %v673
      %v675 = vpop.f32.mrb[0].mxu0
      %v676 = vpop.f32.mrb[0].mxu0
      %v677 = vadd.f32 0.0, %v676
      %v678 = vpop.f32.mrb[0].mxu0
      %679 = vmatprep.mubr.bf16.mxu0 0
      %680 = vmatmul.mubr.bf16.gmra.mrb[0].mxu0 %v590
      %v681 = vpop.f32.mrb[0].mxu0
      %v682 = vadd.f32 0.0, %v681
      %v683 = vpop.f32.mrb[0].mxu0
      %v684 = vpop.f32.mrb[0].mxu0
      %v685 = vadd.f32 0.0, %v684
      %v686 = vpop.f32.mrb[0].mxu0
      %687 = vmatprep.mubr.bf16.mxu0 0
      %688 = vmatmul.mubr.bf16.gmra.mrb[0].mxu0 %v593
      %v689 = vpop.f32.mrb[0].mxu0
      %v690 = vadd.f32 0.0, %v689
      %v691 = vpop.f32.mrb[0].mxu0
      %v692 = vpop.f32.mrb[0].mxu0
      %v693 = vadd.f32 0.0, %v692
      %v694 = vpop.f32.mrb[0].mxu0
      %695 = vdwg.mxu0
      %v696 = vld [vmem:[%s2] sm:$0x1]
      %v698 = vlaneseq
      %v699 = vshrl.u32 %v698, 7
      %v700 = vsub.s32 0, %v699
      %v701 = vrot.slane %v696, %v700
      %v703 = vmul.f32 %v634, %v701
      %v704 = vmul.f32 %v637, %v701
      %v705 = vmul.f32 %v642, %v701
      %v706 = vmul.f32 %v645, %v701
      %v707 = vmul.f32 %v650, %v701
      %v708 = vmul.f32 %v653, %v701
      %v709 = vmul.f32 %v658, %v701
      %v710 = vmul.f32 %v661, %v701
      %v711 = vmul.f32 %v666, %v701
      %v712 = vmul.f32 %v669, %v701
      %v713 = vmul.f32 %v674, %v701
      %v714 = vmul.f32 %v677, %v701
      %v715 = vmul.f32 %v682, %v701
      %v716 = vmul.f32 %v685, %v701
      %v717 = vmul.f32 %v690, %v701
      %v718 = vmul.f32 %v693, %v701
      %v719 = vld [vmem:[%s3] sm:$0x1]
      %v721 = vlaneseq
      %v722 = vshrl.u32 %v721, 7
      %v723 = vsub.s32 0, %v722
      %v724 = vrot.slane %v719, %v723
      %v726 = vadd.f32 %v703, %v724
      %v727 = vadd.f32 %v704, %v724
      %v728 = vadd.f32 %v705, %v724
      %v729 = vadd.f32 %v706, %v724
      %v730 = vadd.f32 %v707, %v724
      %v731 = vadd.f32 %v708, %v724
      %v732 = vadd.f32 %v709, %v724
      %v733 = vadd.f32 %v710, %v724
      %v734 = vadd.f32 %v711, %v724
      %v735 = vadd.f32 %v712, %v724
      %v736 = vadd.f32 %v713, %v724
      %v737 = vadd.f32 %v714, %v724
      %v738 = vadd.f32 %v715, %v724
      %v739 = vadd.f32 %v716, %v724
      %v740 = vadd.f32 %v717, %v724
      %v741 = vadd.f32 %v718, %v724
      %v742 = vxor.u32 %v726, 2147483648
      %v743 = vxor.u32 %v727, 2147483648
      %v744 = vxor.u32 %v728, 2147483648
      %v745 = vxor.u32 %v729, 2147483648
      %v746 = vxor.u32 %v730, 2147483648
      %v747 = vxor.u32 %v731, 2147483648
      %v748 = vxor.u32 %v732, 2147483648
      %v749 = vxor.u32 %v733, 2147483648
      %v750 = vxor.u32 %v734, 2147483648
      %v751 = vxor.u32 %v735, 2147483648
      %v752 = vxor.u32 %v736, 2147483648
      %v753 = vxor.u32 %v737, 2147483648
      %v754 = vxor.u32 %v738, 2147483648
      %v755 = vxor.u32 %v739, 2147483648
      %v756 = vxor.u32 %v740, 2147483648
      %v757 = vxor.u32 %v741, 2147483648
      %v758 = vmul.f32 %v742, 1.442695
      %v759 = vpow.pop %v758
      %v760 = vmul.f32 %v743, 1.442695
      %v761 = vpow.pop %v760
      %v762 = vmul.f32 %v744, 1.442695
      %v763 = vpow.pop %v762
      %v764 = vmul.f32 %v745, 1.442695
      %v765 = vpow.pop %v764
      %v766 = vmul.f32 %v746, 1.442695
      %v767 = vpow.pop %v766
      %v768 = vmul.f32 %v747, 1.442695
      %v769 = vpow.pop %v768
      %v770 = vmul.f32 %v748, 1.442695
      %v771 = vpow.pop %v770
      %v772 = vmul.f32 %v749, 1.442695
      %v773 = vpow.pop %v772
      %v774 = vmul.f32 %v750, 1.442695
      %v775 = vpow.pop %v774
      %v776 = vmul.f32 %v751, 1.442695
      %v777 = vpow.pop %v776
      %v778 = vmul.f32 %v752, 1.442695
      %v779 = vpow.pop %v778
      %v780 = vmul.f32 %v753, 1.442695
      %v781 = vpow.pop %v780
      %v782 = vmul.f32 %v754, 1.442695
      %v783 = vpow.pop %v782
      %v784 = vmul.f32 %v755, 1.442695
      %v785 = vpow.pop %v784
      %v786 = vmul.f32 %v756, 1.442695
      %v787 = vpow.pop %v786
      %v788 = vmul.f32 %v757, 1.442695
      %v789 = vpow.pop %v788
      %v790 = vadd.f32 %v759, 1.0
      %v791 = vadd.f32 %v761, 1.0
      %v792 = vadd.f32 %v763, 1.0
      %v793 = vadd.f32 %v765, 1.0
      %v794 = vadd.f32 %v767, 1.0
      %v795 = vadd.f32 %v769, 1.0
      %v796 = vadd.f32 %v771, 1.0
      %v797 = vadd.f32 %v773, 1.0
      %v798 = vadd.f32 %v775, 1.0
      %v799 = vadd.f32 %v777, 1.0
      %v800 = vadd.f32 %v779, 1.0
      %v801 = vadd.f32 %v781, 1.0
      %v802 = vadd.f32 %v783, 1.0
      %v803 = vadd.f32 %v785, 1.0
      %v804 = vadd.f32 %v787, 1.0
      %v805 = vadd.f32 %v789, 1.0
      %v806 = vrcp.pop %v790
      %v807 = vmul.f32 1.0, %v806
      %v808 = vrcp.pop %v791
      %v809 = vmul.f32 1.0, %v808
      %v810 = vrcp.pop %v792
      %v811 = vmul.f32 1.0, %v810
      %v812 = vrcp.pop %v793
      %v813 = vmul.f32 1.0, %v812
      %v814 = vrcp.pop %v794
      %v815 = vmul.f32 1.0, %v814
      %v816 = vrcp.pop %v795
      %v817 = vmul.f32 1.0, %v816
      %v818 = vrcp.pop %v796
      %v819 = vmul.f32 1.0, %v818
      %v820 = vrcp.pop %v797
      %v821 = vmul.f32 1.0, %v820
      %v822 = vrcp.pop %v798
      %v823 = vmul.f32 1.0, %v822
      %v824 = vrcp.pop %v799
      %v825 = vmul.f32 1.0, %v824
      %v826 = vrcp.pop %v800
      %v827 = vmul.f32 1.0, %v826
      %v828 = vrcp.pop %v801
      %v829 = vmul.f32 1.0, %v828
      %v830 = vrcp.pop %v802
      %v831 = vmul.f32 1.0, %v830
      %v832 = vrcp.pop %v803
      %v833 = vmul.f32 1.0, %v832
      %v834 = vrcp.pop %v804
      %v835 = vmul.f32 1.0, %v834
      %v836 = vrcp.pop %v805
      %v837 = vmul.f32 1.0, %v836
      %v838 = vmul.f32 %v726, %v807
      %v839 = vmul.f32 %v727, %v809
      %v840 = vmul.f32 %v728, %v811
      %v841 = vmul.f32 %v729, %v813
      %v842 = vmul.f32 %v730, %v815
      %v843 = vmul.f32 %v731, %v817
      %v844 = vmul.f32 %v732, %v819
      %v845 = vmul.f32 %v733, %v821
      %v846 = vmul.f32 %v734, %v823
      %v847 = vmul.f32 %v735, %v825
      %v848 = vmul.f32 %v736, %v827
      %v849 = vmul.f32 %v737, %v829
      %v850 = vmul.f32 %v738, %v831
      %v851 = vmul.f32 %v739, %v833
      %v852 = vmul.f32 %v740, %v835
      %v853 = vmul.f32 %v741, %v837
      %v854 = vpack.c.bf16 %v839, %v838
      %v855 = vpack.c.bf16 %v841, %v840
      %v856 = vpack.c.bf16 %v843, %v842
      %v857 = vpack.c.bf16 %v845, %v844
      %v858 = vpack.c.bf16 %v847, %v846
      %v859 = vpack.c.bf16 %v849, %v848
      %v860 = vpack.c.bf16 %v851, %v850
      %v861 = vpack.c.bf16 %v853, %v852
      %v862 = vld [vmem:[%s4] sm:$0x3]
      %vm863 = vcmask 31744
      %v865 = vsel %vm863, %v854, 0
      %v868 = vsel %vm863, %v855, 0
      %v871 = vsel %vm863, %v856, 0
      %v874 = vsel %vm863, %v857, 0
      %v877 = vsel %vm863, %v858, 0
      %v880 = vsel %vm863, %v859, 0
      %v883 = vsel %vm863, %v860, 0
      %v886 = vsel %vm863, %v861, 0
      %vm888 = vcmask 1041408
      %v890 = vsel %vm888, %v862, 0
      %892 = vmatprep.subr.bf16.mxu0 0
      %893 = vmatpush1.bf16.msra.mxu0 %v890
      %894 = vmatprep.subr.bf16.mxu0 0
      %895 = vmatpush1.bf16.msra.mxu0 0
      %896 = vmatprep.subr.bf16.mxu0 0
      %897 = vmatpush1.bf16.msra.mxu0 0
      %898 = vmatprep.subr.bf16.mxu0 0
      %899 = vmatpush1.bf16.msra.mxu0 0
      %900 = vmatprep.subr.bf16.mxu0 0
      %901 = vmatpush1.bf16.msra.mxu0 0
      %902 = vmatprep.subr.bf16.mxu0 0
      %903 = vmatpush1.bf16.msra.mxu0 0
      %904 = vmatprep.subr.bf16.mxu0 0
      %905 = vmatpush1.bf16.msra.mxu0 0
      %906 = vmatprep.subr.bf16.mxu0 0
      %907 = vmatpush1.bf16.msra.mxu0 0
      %908 = vmatprep.subr.bf16.mxu0 0
      %909 = vmatpush1.bf16.msra.mxu0 0
      %910 = vmatprep.subr.bf16.mxu0 0
      %911 = vmatpush1.bf16.msra.mxu0 0
      %912 = vmatprep.subr.bf16.mxu0 0
      %913 = vmatpush1.bf16.msra.mxu0 0
      %914 = vmatprep.subr.bf16.mxu0 0
      %915 = vmatpush1.bf16.msra.mxu0 0
      %916 = vmatprep.subr.bf16.mxu0 0
      %917 = vmatpush1.bf16.msra.mxu0 0
      %918 = vmatprep.subr.bf16.mxu0 0
      %919 = vmatpush1.bf16.msra.mxu0 0
      %920 = vmatprep.subr.bf16.mxu0 0
      %921 = vmatpush1.bf16.msra.mxu0 0
      %922 = vmatprep.subr.bf16.mxu0 0
      %923 = vmatpush1.bf16.msra.mxu0 0
      %924 = vmatprep.mubr.bf16.mxu0 0
      %925 = vmatmul.mubr.bf16.gmra.mrb[0].mxu0 %v865
      %v926 = vpop.f32.mrb[0].mxu0
      %v927 = vadd.f32 0.0, %v926
      %v928 = vpop.f32.mrb[0].mxu0
      %v929 = vpop.f32.mrb[0].mxu0
      %v930 = vadd.f32 0.0, %v929
      %v931 = vpop.f32.mrb[0].mxu0
      %932 = vmatprep.mubr.bf16.mxu0 0
      %933 = vmatmul.mubr.bf16.gmra.mrb[0].mxu0 %v868
      %v934 = vpop.f32.mrb[0].mxu0
      %v935 = vadd.f32 0.0, %v934
      %v936 = vpop.f32.mrb[0].mxu0
      %v937 = vpop.f32.mrb[0].mxu0
      %v938 = vadd.f32 0.0, %v937
      %v939 = vpop.f32.mrb[0].mxu0
      %940 = vmatprep.mubr.bf16.mxu0 0
      %941 = vmatmul.mubr.bf16.gmra.mrb[0].mxu0 %v871
      %v942 = vpop.f32.mrb[0].mxu0
      %v943 = vadd.f32 0.0, %v942
      %v944 = vpop.f32.mrb[0].mxu0
      %v945 = vpop.f32.mrb[0].mxu0
      %v946 = vadd.f32 0.0, %v945
      %v947 = vpop.f32.mrb[0].mxu0
      %948 = vmatprep.mubr.bf16.mxu0 0
      %949 = vmatmul.mubr.bf16.gmra.mrb[0].mxu0 %v874
      %v950 = vpop.f32.mrb[0].mxu0
      %v951 = vadd.f32 0.0, %v950
      %v952 = vpop.f32.mrb[0].mxu0
      %v953 = vpop.f32.mrb[0].mxu0
      %v954 = vadd.f32 0.0, %v953
      %v955 = vpop.f32.mrb[0].mxu0
      %956 = vmatprep.mubr.bf16.mxu0 0
      %957 = vmatmul.mubr.bf16.gmra.mrb[0].mxu0 %v877
      %v958 = vpop.f32.mrb[0].mxu0
      %v959 = vadd.f32 0.0, %v958
      %v960 = vpop.f32.mrb[0].mxu0
      %v961 = vpop.f32.mrb[0].mxu0
      %v962 = vadd.f32 0.0, %v961
      %v963 = vpop.f32.mrb[0].mxu0
      %964 = vmatprep.mubr.bf16.mxu0 0
      %965 = vmatmul.mubr.bf16.gmra.mrb[0].mxu0 %v880
      %v966 = vpop.f32.mrb[0].mxu0
      %v967 = vadd.f32 0.0, %v966
      %v968 = vpop.f32.mrb[0].mxu0
      %v969 = vpop.f32.mrb[0].mxu0
      %v970 = vadd.f32 0.0, %v969
      %v971 = vpop.f32.mrb[0].mxu0
      %972 = vmatprep.mubr.bf16.mxu0 0
      %973 = vmatmul.mubr.bf16.gmra.mrb[0].mxu0 %v883
      %v974 = vpop.f32.mrb[0].mxu0
      %v975 = vadd.f32 0.0, %v974
      %v976 = vpop.f32.mrb[0].mxu0
      %v977 = vpop.f32.mrb[0].mxu0
      %v978 = vadd.f32 0.0, %v977
      %v979 = vpop.f32.mrb[0].mxu0
      %980 = vmatprep.mubr.bf16.mxu0 0
      %981 = vmatmul.mubr.bf16.gmra.mrb[0].mxu0 %v886
      %v982 = vpop.f32.mrb[0].mxu0
      %v983 = vadd.f32 0.0, %v982
      %v984 = vpop.f32.mrb[0].mxu0
      %v985 = vpop.f32.mrb[0].mxu0
      %v986 = vadd.f32 0.0, %v985
      %v987 = vpop.f32.mrb[0].mxu0
      %988 = vdwg.mxu0
      %v989 = vld [vmem:[%s5] sm:$0x1]
      %v991 = vlaneseq
      %v992 = vshrl.u32 %v991, 7
      %v993 = vsub.s32 0, %v992
      %v994 = vrot.slane %v989, %v993
      %v996 = vmul.f32 %v927, %v994
      %v997 = vmul.f32 %v930, %v994
      %v998 = vmul.f32 %v935, %v994
      %v999 = vmul.f32 %v938, %v994
      %v1000 = vmul.f32 %v943, %v994
      %v1001 = vmul.f32 %v946, %v994
      %v1002 = vmul.f32 %v951, %v994
      %v1003 = vmul.f32 %v954, %v994
      %v1004 = vmul.f32 %v959, %v994
      %v1005 = vmul.f32 %v962, %v994
      %v1006 = vmul.f32 %v967, %v994
      %v1007 = vmul.f32 %v970, %v994
      %v1008 = vmul.f32 %v975, %v994
      %v1009 = vmul.f32 %v978, %v994
      %v1010 = vmul.f32 %v983, %v994
      %v1011 = vmul.f32 %v986, %v994
      %v1012 = vld [vmem:[%s6] sm:$0x1]
      %v1014 = vlaneseq
      %v1015 = vshrl.u32 %v1014, 7
      %v1016 = vsub.s32 0, %v1015
      %v1017 = vrot.slane %v1012, %v1016
      %v1019 = vadd.f32 %v996, %v1017
      %v1020 = vadd.f32 %v997, %v1017
      %v1021 = vadd.f32 %v998, %v1017
      %v1022 = vadd.f32 %v999, %v1017
      %v1023 = vadd.f32 %v1000, %v1017
      %v1024 = vadd.f32 %v1001, %v1017
      %v1025 = vadd.f32 %v1002, %v1017
      %v1026 = vadd.f32 %v1003, %v1017
      %v1027 = vadd.f32 %v1004, %v1017
      %v1028 = vadd.f32 %v1005, %v1017
      %v1029 = vadd.f32 %v1006, %v1017
      %v1030 = vadd.f32 %v1007, %v1017
      %v1031 = vadd.f32 %v1008, %v1017
      %v1032 = vadd.f32 %v1009, %v1017
      %v1033 = vadd.f32 %v1010, %v1017
      %v1034 = vadd.f32 %v1011, %v1017
      %v1035 = vxor.u32 %v1019, 2147483648
      %v1036 = vxor.u32 %v1020, 2147483648
      %v1037 = vxor.u32 %v1021, 2147483648
      %v1038 = vxor.u32 %v1022, 2147483648
      %v1039 = vxor.u32 %v1023, 2147483648
      %v1040 = vxor.u32 %v1024, 2147483648
      %v1041 = vxor.u32 %v1025, 2147483648
      %v1042 = vxor.u32 %v1026, 2147483648
      %v1043 = vxor.u32 %v1027, 2147483648
      %v1044 = vxor.u32 %v1028, 2147483648
      %v1045 = vxor.u32 %v1029, 2147483648
      %v1046 = vxor.u32 %v1030, 2147483648
      %v1047 = vxor.u32 %v1031, 2147483648
      %v1048 = vxor.u32 %v1032, 2147483648
      %v1049 = vxor.u32 %v1033, 2147483648
      %v1050 = vxor.u32 %v1034, 2147483648
      %v1051 = vmul.f32 %v1035, 1.442695
      %v1052 = vpow.pop %v1051
      %v1053 = vmul.f32 %v1036, 1.442695
      %v1054 = vpow.pop %v1053
      %v1055 = vmul.f32 %v1037, 1.442695
      %v1056 = vpow.pop %v1055
      %v1057 = vmul.f32 %v1038, 1.442695
      %v1058 = vpow.pop %v1057
      %v1059 = vmul.f32 %v1039, 1.442695
      %v1060 = vpow.pop %v1059
      %v1061 = vmul.f32 %v1040, 1.442695
      %v1062 = vpow.pop %v1061
      %v1063 = vmul.f32 %v1041, 1.442695
      %v1064 = vpow.pop %v1063
      %v1065 = vmul.f32 %v1042, 1.442695
      %v1066 = vpow.pop %v1065
      %v1067 = vmul.f32 %v1043, 1.442695
      %v1068 = vpow.pop %v1067
      %v1069 = vmul.f32 %v1044, 1.442695
      %v1070 = vpow.pop %v1069
      %v1071 = vmul.f32 %v1045, 1.442695
      %v1072 = vpow.pop %v1071
      %v1073 = vmul.f32 %v1046, 1.442695
      %v1074 = vpow.pop %v1073
      %v1075 = vmul.f32 %v1047, 1.442695
      %v1076 = vpow.pop %v1075
      %v1077 = vmul.f32 %v1048, 1.442695
      %v1078 = vpow.pop %v1077
      %v1079 = vmul.f32 %v1049, 1.442695
      %v1080 = vpow.pop %v1079
      %v1081 = vmul.f32 %v1050, 1.442695
      %v1082 = vpow.pop %v1081
      %v1083 = vadd.f32 %v1052, 1.0
      %v1084 = vadd.f32 %v1054, 1.0
      %v1085 = vadd.f32 %v1056, 1.0
      %v1086 = vadd.f32 %v1058, 1.0
      %v1087 = vadd.f32 %v1060, 1.0
      %v1088 = vadd.f32 %v1062, 1.0
      %v1089 = vadd.f32 %v1064, 1.0
      %v1090 = vadd.f32 %v1066, 1.0
      %v1091 = vadd.f32 %v1068, 1.0
      %v1092 = vadd.f32 %v1070, 1.0
      %v1093 = vadd.f32 %v1072, 1.0
      %v1094 = vadd.f32 %v1074, 1.0
      %v1095 = vadd.f32 %v1076, 1.0
      %v1096 = vadd.f32 %v1078, 1.0
      %v1097 = vadd.f32 %v1080, 1.0
      %v1098 = vadd.f32 %v1082, 1.0
      %v1099 = vrcp.pop %v1083
      %v1100 = vmul.f32 1.0, %v1099
      %v1101 = vrcp.pop %v1084
      %v1102 = vmul.f32 1.0, %v1101
      %v1103 = vrcp.pop %v1085
      %v1104 = vmul.f32 1.0, %v1103
      %v1105 = vrcp.pop %v1086
      %v1106 = vmul.f32 1.0, %v1105
      %v1107 = vrcp.pop %v1087
      %v1108 = vmul.f32 1.0, %v1107
      %v1109 = vrcp.pop %v1088
      %v1110 = vmul.f32 1.0, %v1109
      %v1111 = vrcp.pop %v1089
      %v1112 = vmul.f32 1.0, %v1111
      %v1113 = vrcp.pop %v1090
      %v1114 = vmul.f32 1.0, %v1113
      %v1115 = vrcp.pop %v1091
      %v1116 = vmul.f32 1.0, %v1115
      %v1117 = vrcp.pop %v1092
      %v1118 = vmul.f32 1.0, %v1117
      %v1119 = vrcp.pop %v1093
      %v1120 = vmul.f32 1.0, %v1119
      %v1121 = vrcp.pop %v1094
      %v1122 = vmul.f32 1.0, %v1121
      %v1123 = vrcp.pop %v1095
      %v1124 = vmul.f32 1.0, %v1123
      %v1125 = vrcp.pop %v1096
      %v1126 = vmul.f32 1.0, %v1125
      %v1127 = vrcp.pop %v1097
      %v1128 = vmul.f32 1.0, %v1127
      %v1129 = vrcp.pop %v1098
      %v1130 = vmul.f32 1.0, %v1129
      %v1131 = vmul.f32 %v1019, %v1100
      %v1132 = vmul.f32 %v1020, %v1102
      %v1133 = vmul.f32 %v1021, %v1104
      %v1134 = vmul.f32 %v1022, %v1106
      %v1135 = vmul.f32 %v1023, %v1108
      %v1136 = vmul.f32 %v1024, %v1110
      %v1137 = vmul.f32 %v1025, %v1112
      %v1138 = vmul.f32 %v1026, %v1114
      %v1139 = vmul.f32 %v1027, %v1116
      %v1140 = vmul.f32 %v1028, %v1118
      %v1141 = vmul.f32 %v1029, %v1120
      %v1142 = vmul.f32 %v1030, %v1122
      %v1143 = vmul.f32 %v1031, %v1124
      %v1144 = vmul.f32 %v1032, %v1126
      %v1145 = vmul.f32 %v1033, %v1128
      %v1146 = vmul.f32 %v1034, %v1130
      %v1147 = vpack.c.bf16 %v1132, %v1131
      %v1148 = vpack.c.bf16 %v1134, %v1133
      %v1149 = vpack.c.bf16 %v1136, %v1135
      %v1150 = vpack.c.bf16 %v1138, %v1137
      %v1151 = vpack.c.bf16 %v1140, %v1139
      %v1152 = vpack.c.bf16 %v1142, %v1141
      %v1153 = vpack.c.bf16 %v1144, %v1143
      %v1154 = vpack.c.bf16 %v1146, %v1145
      %v1155 = vld [vmem:[%s7] sm:$0xf]
      %v1156 = vld [vmem:[%s8] sm:$0x1]
      %v1158 = vlaneseq
      %v1159 = vshrl.u32 %v1158, 7
      %v1160 = vsub.s32 0, %v1159
      %v1161 = vrot.slane %v1156, %v1160
      %vm1163 = vcmask 64512
      %v1165 = vsel %vm1163, %v1147, 0
      %v1168 = vsel %vm1163, %v1148, 0
      %v1171 = vsel %vm1163, %v1149, 0
      %v1174 = vsel %vm1163, %v1150, 0
      %v1177 = vsel %vm1163, %v1151, 0
      %v1180 = vsel %vm1163, %v1152, 0
      %v1183 = vsel %vm1163, %v1153, 0
      %v1186 = vsel %vm1163, %v1154, 0
      %v1189 = vsel %vm595, %v1155, 0
      %1191 = vmatprep.subr.bf16.mxu0 0
      %1192 = vmatpush1.bf16.msra.mxu0 %v1189
      %1193 = vmatprep.subr.bf16.mxu0 0
      %1194 = vmatpush1.bf16.msra.mxu0 0
      %1195 = vmatprep.subr.bf16.mxu0 0
      %1196 = vmatpush1.bf16.msra.mxu0 0
      %1197 = vmatprep.subr.bf16.mxu0 0
      %1198 = vmatpush1.bf16.msra.mxu0 0
      %1199 = vmatprep.subr.bf16.mxu0 0
      %1200 = vmatpush1.bf16.msra.mxu0 0
      %1201 = vmatprep.subr.bf16.mxu0 0
      %1202 = vmatpush1.bf16.msra.mxu0 0
      %1203 = vmatprep.subr.bf16.mxu0 0
      %1204 = vmatpush1.bf16.msra.mxu0 0
      %1205 = vmatprep.subr.bf16.mxu0 0
      %1206 = vmatpush1.bf16.msra.mxu0 0
      %1207 = vmatprep.subr.bf16.mxu0 0
      %1208 = vmatpush1.bf16.msra.mxu0 0
      %1209 = vmatprep.subr.bf16.mxu0 0
      %1210 = vmatpush1.bf16.msra.mxu0 0
      %1211 = vmatprep.subr.bf16.mxu0 0
      %1212 = vmatpush1.bf16.msra.mxu0 0
      %1213 = vmatprep.subr.bf16.mxu0 0
      %1214 = vmatpush1.bf16.msra.mxu0 0
      %1215 = vmatprep.subr.bf16.mxu0 0
      %1216 = vmatpush1.bf16.msra.mxu0 0
      %1217 = vmatprep.subr.bf16.mxu0 0
      %1218 = vmatpush1.bf16.msra.mxu0 0
      %1219 = vmatprep.subr.bf16.mxu0 0
      %1220 = vmatpush1.bf16.msra.mxu0 0
      %1221 = vmatprep.subr.bf16.mxu0 0
      %1222 = vmatpush1.bf16.msra.mxu0 0
      %1223 = vmatprep.mubr.bf16.mxu0 0
      %1224 = vmatmul.mubr.bf16.gmra.mrb[0].mxu0 %v1165
      %v1225 = vpop.f32.mrb[0].mxu0
      %v1226 = vadd.f32 %v1161, %v1225
      %v1227 = vpop.f32.mrb[0].mxu0
      %v1228 = vpop.f32.mrb[0].mxu0
      %v1229 = vadd.f32 %v1161, %v1228
      %v1230 = vpop.f32.mrb[0].mxu0
      %1231 = vmatprep.mubr.bf16.mxu0 0
      %1232 = vmatmul.mubr.bf16.gmra.mrb[0].mxu0 %v1168
      %v1233 = vpop.f32.mrb[0].mxu0
      %v1234 = vadd.f32 %v1161, %v1233
      %v1235 = vpop.f32.mrb[0].mxu0
      %v1236 = vpop.f32.mrb[0].mxu0
      %v1237 = vadd.f32 %v1161, %v1236
      %v1238 = vpop.f32.mrb[0].mxu0
      %1239 = vmatprep.mubr.bf16.mxu0 0
      %1240 = vmatmul.mubr.bf16.gmra.mrb[0].mxu0 %v1171
      %v1241 = vpop.f32.mrb[0].mxu0
      %v1242 = vadd.f32 %v1161, %v1241
      %v1243 = vpop.f32.mrb[0].mxu0
      %v1244 = vpop.f32.mrb[0].mxu0
      %v1245 = vadd.f32 %v1161, %v1244
      %v1246 = vpop.f32.mrb[0].mxu0
      %1247 = vmatprep.mubr.bf16.mxu0 0
      %1248 = vmatmul.mubr.bf16.gmra.mrb[0].mxu0 %v1174
      %v1249 = vpop.f32.mrb[0].mxu0
      %v1250 = vadd.f32 %v1161, %v1249
      %v1251 = vpop.f32.mrb[0].mxu0
      %v1252 = vpop.f32.mrb[0].mxu0
      %v1253 = vadd.f32 %v1161, %v1252
      %v1254 = vpop.f32.mrb[0].mxu0
      %1255 = vmatprep.mubr.bf16.mxu0 0
      %1256 = vmatmul.mubr.bf16.gmra.mrb[0].mxu0 %v1177
      %v1257 = vpop.f32.mrb[0].mxu0
      %v1258 = vadd.f32 %v1161, %v1257
      %v1259 = vpop.f32.mrb[0].mxu0
      %v1260 = vpop.f32.mrb[0].mxu0
      %v1261 = vadd.f32 %v1161, %v1260
      %v1262 = vpop.f32.mrb[0].mxu0
      %1263 = vmatprep.mubr.bf16.mxu0 0
      %1264 = vmatmul.mubr.bf16.gmra.mrb[0].mxu0 %v1180
      %v1265 = vpop.f32.mrb[0].mxu0
      %v1266 = vadd.f32 %v1161, %v1265
      %v1267 = vpop.f32.mrb[0].mxu0
      %v1268 = vpop.f32.mrb[0].mxu0
      %v1269 = vadd.f32 %v1161, %v1268
      %v1270 = vpop.f32.mrb[0].mxu0
      %1271 = vmatprep.mubr.bf16.mxu0 0
      %1272 = vmatmul.mubr.bf16.gmra.mrb[0].mxu0 %v1183
      %v1273 = vpop.f32.mrb[0].mxu0
      %v1274 = vadd.f32 %v1161, %v1273
      %v1275 = vpop.f32.mrb[0].mxu0
      %v1276 = vpop.f32.mrb[0].mxu0
      %v1277 = vadd.f32 %v1161, %v1276
      %v1278 = vpop.f32.mrb[0].mxu0
      %1279 = vmatprep.mubr.bf16.mxu0 0
      %1280 = vmatmul.mubr.bf16.gmra.mrb[0].mxu0 %v1186
      %v1281 = vpop.f32.mrb[0].mxu0
      %v1282 = vadd.f32 %v1161, %v1281
      %v1283 = vpop.f32.mrb[0].mxu0
      %v1284 = vpop.f32.mrb[0].mxu0
      %v1285 = vadd.f32 %v1161, %v1284
      %v1286 = vpop.f32.mrb[0].mxu0
      %1287 = vdwg.mxu0
      %v1288 = vld [vmem:[%s9] sm:$0xf]
      %v1289 = vld [vmem:[%s10] sm:$0x1]
      %v1291 = vlaneseq
      %v1292 = vshrl.u32 %v1291, 7
      %v1293 = vsub.s32 0, %v1292
      %v1294 = vrot.slane %v1289, %v1293
      %v1297 = vsel %vm595, %v1288, 0
      %1299 = vmatprep.subr.bf16.mxu0 0
      %1300 = vmatpush1.bf16.msra.mxu0 %v1297
      %1301 = vmatprep.subr.bf16.mxu0 0
      %1302 = vmatpush1.bf16.msra.mxu0 0
      %1303 = vmatprep.subr.bf16.mxu0 0
      %1304 = vmatpush1.bf16.msra.mxu0 0
      %1305 = vmatprep.subr.bf16.mxu0 0
      %1306 = vmatpush1.bf16.msra.mxu0 0
      %1307 = vmatprep.subr.bf16.mxu0 0
      %1308 = vmatpush1.bf16.msra.mxu0 0
      %1309 = vmatprep.subr.bf16.mxu0 0
      %1310 = vmatpush1.bf16.msra.mxu0 0
      %1311 = vmatprep.subr.bf16.mxu0 0
      %1312 = vmatpush1.bf16.msra.mxu0 0
      %1313 = vmatprep.subr.bf16.mxu0 0
      %1314 = vmatpush1.bf16.msra.mxu0 0
      %1315 = vmatprep.subr.bf16.mxu0 0
      %1316 = vmatpush1.bf16.msra.mxu0 0
      %1317 = vmatprep.subr.bf16.mxu0 0
      %1318 = vmatpush1.bf16.msra.mxu0 0
      %1319 = vmatprep.subr.bf16.mxu0 0
      %1320 = vmatpush1.bf16.msra.mxu0 0
      %1321 = vmatprep.subr.bf16.mxu0 0
      %1322 = vmatpush1.bf16.msra.mxu0 0
      %1323 = vmatprep.subr.bf16.mxu0 0
      %1324 = vmatpush1.bf16.msra.mxu0 0
      %1325 = vmatprep.subr.bf16.mxu0 0
      %1326 = vmatpush1.bf16.msra.mxu0 0
      %1327 = vmatprep.subr.bf16.mxu0 0
      %1328 = vmatpush1.bf16.msra.mxu0 0
      %1329 = vmatprep.subr.bf16.mxu0 0
      %1330 = vmatpush1.bf16.msra.mxu0 0
      %1331 = vmatprep.mubr.bf16.mxu0 0
      %1332 = vmatmul.mubr.bf16.gmra.mrb[0].mxu0 %v1165
      %v1333 = vpop.f32.mrb[0].mxu0
      %v1334 = vadd.f32 %v1294, %v1333
      %v1335 = vpop.f32.mrb[0].mxu0
      %v1336 = vpop.f32.mrb[0].mxu0
      %v1337 = vadd.f32 %v1294, %v1336
      %v1338 = vpop.f32.mrb[0].mxu0
      %1339 = vmatprep.mubr.bf16.mxu0 0
      %1340 = vmatmul.mubr.bf16.gmra.mrb[0].mxu0 %v1168
      %v1341 = vpop.f32.mrb[0].mxu0
      %v1342 = vadd.f32 %v1294, %v1341
      %v1343 = vpop.f32.mrb[0].mxu0
      %v1344 = vpop.f32.mrb[0].mxu0
      %v1345 = vadd.f32 %v1294, %v1344
      %v1346 = vpop.f32.mrb[0].mxu0
      %1347 = vmatprep.mubr.bf16.mxu0 0
      %1348 = vmatmul.mubr.bf16.gmra.mrb[0].mxu0 %v1171
      %v1349 = vpop.f32.mrb[0].mxu0
      %v1350 = vadd.f32 %v1294, %v1349
      %v1351 = vpop.f32.mrb[0].mxu0
      %v1352 = vpop.f32.mrb[0].mxu0
      %v1353 = vadd.f32 %v1294, %v1352
      %v1354 = vpop.f32.mrb[0].mxu0
      %1355 = vmatprep.mubr.bf16.mxu0 0
      %1356 = vmatmul.mubr.bf16.gmra.mrb[0].mxu0 %v1174
      %v1357 = vpop.f32.mrb[0].mxu0
      %v1358 = vadd.f32 %v1294, %v1357
      %v1359 = vpop.f32.mrb[0].mxu0
      %v1360 = vpop.f32.mrb[0].mxu0
      %v1361 = vadd.f32 %v1294, %v1360
      %v1362 = vpop.f32.mrb[0].mxu0
      %1363 = vmatprep.mubr.bf16.mxu0 0
      %1364 = vmatmul.mubr.bf16.gmra.mrb[0].mxu0 %v1177
      %v1365 = vpop.f32.mrb[0].mxu0
      %v1366 = vadd.f32 %v1294, %v1365
      %v1367 = vpop.f32.mrb[0].mxu0
      %v1368 = vpop.f32.mrb[0].mxu0
      %v1369 = vadd.f32 %v1294, %v1368
      %v1370 = vpop.f32.mrb[0].mxu0
      %1371 = vmatprep.mubr.bf16.mxu0 0
      %1372 = vmatmul.mubr.bf16.gmra.mrb[0].mxu0 %v1180
      %v1373 = vpop.f32.mrb[0].mxu0
      %v1374 = vadd.f32 %v1294, %v1373
      %v1375 = vpop.f32.mrb[0].mxu0
      %v1376 = vpop.f32.mrb[0].mxu0
      %v1377 = vadd.f32 %v1294, %v1376
      %v1378 = vpop.f32.mrb[0].mxu0
      %1379 = vmatprep.mubr.bf16.mxu0 0
      %1380 = vmatmul.mubr.bf16.gmra.mrb[0].mxu0 %v1183
      %v1381 = vpop.f32.mrb[0].mxu0
      %v1382 = vadd.f32 %v1294, %v1381
      %v1383 = vpop.f32.mrb[0].mxu0
      %v1384 = vpop.f32.mrb[0].mxu0
      %v1385 = vadd.f32 %v1294, %v1384
      %v1386 = vpop.f32.mrb[0].mxu0
      %1387 = vmatprep.mubr.bf16.mxu0 0
      %1388 = vmatmul.mubr.bf16.gmra.mrb[0].mxu0 %v1186
      %v1389 = vpop.f32.mrb[0].mxu0
      %v1390 = vadd.f32 %v1294, %v1389
      %v1391 = vpop.f32.mrb[0].mxu0
      %v1392 = vpop.f32.mrb[0].mxu0
      %v1393 = vadd.f32 %v1294, %v1392
      %v1394 = vpop.f32.mrb[0].mxu0
      %1395 = vdwg.mxu0
      %v1396 = vpack.c.bf16 %v1229, %v1226
      %v1397 = vpack.c.bf16 %v1237, %v1234
      %v1398 = vpack.c.bf16 %v1245, %v1242
      %v1399 = vpack.c.bf16 %v1253, %v1250
      %v1400 = vpack.c.bf16 %v1261, %v1258
      %v1401 = vpack.c.bf16 %v1269, %v1266
      %v1402 = vpack.c.bf16 %v1277, %v1274
      %v1403 = vpack.c.bf16 %v1285, %v1282
      %v1412 = vunpack.c.l.b16 %v1396
      %v1413 = vunpack.c.h.b16 %v1396
      %v1414 = vunpack.c.l.b16 %v1397
      %v1415 = vunpack.c.h.b16 %v1397
      %v1416 = vunpack.c.l.b16 %v1398
      %v1417 = vunpack.c.h.b16 %v1398
      %v1418 = vunpack.c.l.b16 %v1399
      %v1419 = vunpack.c.h.b16 %v1399
      %v1420 = vunpack.c.l.b16 %v1400
      %v1421 = vunpack.c.h.b16 %v1400
      %v1422 = vunpack.c.l.b16 %v1401
      %v1423 = vunpack.c.h.b16 %v1401
      %v1424 = vunpack.c.l.b16 %v1402
      %v1425 = vunpack.c.h.b16 %v1402
      %v1426 = vunpack.c.l.b16 %v1403
      %v1427 = vunpack.c.h.b16 %v1403
      %v1428 = vpack.c.b16 %v1412, %v1412
      %v1429 = vpack.c.b16 %v1413, %v1413
      %v1430 = vpack.c.b16 %v1414, %v1414
      %v1431 = vpack.c.b16 %v1415, %v1415
      %v1432 = vpack.c.b16 %v1416, %v1416
      %v1433 = vpack.c.b16 %v1417, %v1417
      %v1434 = vpack.c.b16 %v1418, %v1418
      %v1435 = vpack.c.b16 %v1419, %v1419
      %v1436 = vpack.c.b16 %v1420, %v1420
      %v1437 = vpack.c.b16 %v1421, %v1421
      %v1438 = vpack.c.b16 %v1422, %v1422
      %v1439 = vpack.c.b16 %v1423, %v1423
      %v1440 = vpack.c.b16 %v1424, %v1424
      %v1441 = vpack.c.b16 %v1425, %v1425
      %v1442 = vpack.c.b16 %v1426, %v1426
      %v1443 = vpack.c.b16 %v1427, %v1427
      %vm1460 = vcmask 60416
      %1461 = vst.msk [vmem:[%s465] sm:$0xf] %vm1460, %v1428
      %1462 = vst.msk [vmem:[%s465 + $0x4] sm:$0xf] %vm1460, %v1429
      %1463 = vst.msk [vmem:[%s465 + $0x8] sm:$0xf] %vm1460, %v1430
      %1464 = vst.msk [vmem:[%s465 + $0xc] sm:$0xf] %vm1460, %v1431
      %1465 = vst.msk [vmem:[%s465 + $0x10] sm:$0xf] %vm1460, %v1432
      %1466 = vst.msk [vmem:[%s465 + $0x14] sm:$0xf] %vm1460, %v1433
      %1467 = vst.msk [vmem:[%s465 + $0x18] sm:$0xf] %vm1460, %v1434
      %1468 = vst.msk [vmem:[%s465 + $0x1c] sm:$0xf] %vm1460, %v1435
      %1469 = vst.msk [vmem:[%s465 + $0x20] sm:$0xf] %vm1460, %v1436
      %1470 = vst.msk [vmem:[%s465 + $0x24] sm:$0xf] %vm1460, %v1437
      %1471 = vst.msk [vmem:[%s465 + $0x28] sm:$0xf] %vm1460, %v1438
      %1472 = vst.msk [vmem:[%s465 + $0x2c] sm:$0xf] %vm1460, %v1439
      %1473 = vst.msk [vmem:[%s465 + $0x30] sm:$0xf] %vm1460, %v1440
      %1474 = vst.msk [vmem:[%s465 + $0x34] sm:$0xf] %vm1460, %v1441
      %1475 = vst.msk [vmem:[%s465 + $0x38] sm:$0xf] %vm1460, %v1442
      %1476 = vst.msk [vmem:[%s465 + $0x3c] sm:$0xf] %vm1460, %v1443
      %vm1477 = vcmask 261120
      %1478 = vst.msk [vmem:[%s475] sm:$0xff] %vm1477, %v1334
      %1479 = vst.msk [vmem:[%s475 + $0x8] sm:$0xff] %vm1477, %v1337
      %1480 = vst.msk [vmem:[%s475 + $0x10] sm:$0xff] %vm1477, %v1342
      %1481 = vst.msk [vmem:[%s475 + $0x18] sm:$0xff] %vm1477, %v1345
      %1482 = vst.msk [vmem:[%s475 + $0x20] sm:$0xff] %vm1477, %v1350
      %1483 = vst.msk [vmem:[%s475 + $0x28] sm:$0xff] %vm1477, %v1353
      %1484 = vst.msk [vmem:[%s475 + $0x30] sm:$0xff] %vm1477, %v1358
      %1485 = vst.msk [vmem:[%s475 + $0x38] sm:$0xff] %vm1477, %v1361
      %1486 = vst.msk [vmem:[%s475 + $0x40] sm:$0xff] %vm1477, %v1366
      %1487 = vst.msk [vmem:[%s475 + $0x48] sm:$0xff] %vm1477, %v1369
      %1488 = vst.msk [vmem:[%s475 + $0x50] sm:$0xff] %vm1477, %v1374
      %1489 = vst.msk [vmem:[%s475 + $0x58] sm:$0xff] %vm1477, %v1377
      %1490 = vst.msk [vmem:[%s475 + $0x60] sm:$0xff] %vm1477, %v1382
      %1491 = vst.msk [vmem:[%s475 + $0x68] sm:$0xff] %vm1477, %v1385
      %1492 = vst.msk [vmem:[%s475 + $0x70] sm:$0xff] %vm1477, %v1390
      %1493 = vst.msk [vmem:[%s475 + $0x78] sm:$0xff] %vm1477, %v1393
      %s1494 = smul.u32 16, %s29
      %p1495 = scmp.lt.s32.totalorder %s28, 1
      %s1496 = scalar_select %p1495, %s28, 1
      %p1497 = scmp.lt.s32.totalorder %s1494, 31
      %s1498 = scalar_select %p1497, %s1494, 31
      %s1499 = smul.addr %s1496, 32
      %s1500 = sadd.s32 %s1498, %s1499
      %s1501 = smul.addr %s1500, 4
      %s1502 = scalar_lea.vmem %s11, %s1501
      %s1503 = smul.u32 16, %s29
      %p1504 = scmp.lt.s32.totalorder %s28, 1
      %s1505 = scalar_select %p1504, %s28, 1
      %p1506 = scmp.lt.s32.totalorder %s1503, 31
      %s1507 = scalar_select %p1506, %s1503, 31
      %s1508 = smul.addr %s1505, 32
      %s1509 = sadd.s32 %s1507, %s1508
      %s1510 = smul.addr %s1509, 8
      %s1511 = scalar_lea.vmem %s12, %s1510
      // Predicated region
      $region65: #{tpu_custom_call.1} parent=63 // pred_check
        %p1512 = pneg %p294
      $region66: #{tpu_custom_call.1} parent=63 // pred_check_branch
        %1514 = sbr.rel (%p1512) target = $region68
      $region67: #{tpu_custom_call.1} parent=63 // pred_region
        %s1515 = smul.u32 16, %s29
      $region68: #{tpu_custom_call.1} parent=63 // pred_fallthru
        _
      // Predicated region
      $region69: #{tpu_custom_call.1} parent=63 // pred_check
        %p1516 = pneg %p322
      $region70: #{tpu_custom_call.1} parent=63 // pred_check_branch
        %1518 = sbr.rel (%p1516) target = $region72
      $region71: #{tpu_custom_call.1} parent=63 // pred_region
        %s1519 = smul.u32 16, %s29
      $region72: #{tpu_custom_call.1} parent=63 // pred_fallthru
        _
    $region64: #{tpu_custom_call.1} parent=5 // pred_fallthru
      _
    %p1520 = scmp.le.s32.totalorder 2, %s19
    // Predicated region
    $region73: #{tpu_custom_call.1} parent=5 // pred_check
      %p1521 = pneg %p1520
    $region74: #{tpu_custom_call.1} parent=5 // pred_check_branch
      %1523 = sbr.rel (%p1521) target = $region76
    $region75: #{tpu_custom_call.1} parent=5 // pred_region
      %s1524 = ssub.s32 %s19, 2
      // Predicated region
      $region77: #{tpu_custom_call.1} parent=75 // pred_check
        %p1525 = pneg %p300
      $region78: #{tpu_custom_call.1} parent=75 // pred_check_branch
        %1527 = sbr.rel (%p1525) target = $region80
      $region79: #{tpu_custom_call.1} parent=75 // pred_region
        %s1528 = smul.u32 16, %s31
        %p1529 = scmp.lt.s32.totalorder %s30, 1
        %s1530 = scalar_select %p1529, %s30, 1
        %p1531 = scmp.lt.s32.totalorder %s1528, 31
        %s1532 = scalar_select %p1531, %s1528, 31
        %s1533 = smul.addr %s1530, 32
        %s1534 = sadd.s32 %s1532, %s1533
        %s1535 = smul.addr %s1534, 4
        %s1536 = scalar_lea.vmem %s11, %s1535
      $region80: #{tpu_custom_call.1} parent=75 // pred_fallthru
        _
      // Predicated region
      $region81: #{tpu_custom_call.1} parent=75 // pred_check
        %p1537 = pneg %p328
      $region82: #{tpu_custom_call.1} parent=75 // pred_check_branch
        %1539 = sbr.rel (%p1537) target = $region84
      $region83: #{tpu_custom_call.1} parent=75 // pred_region
        %s1540 = smul.u32 16, %s31
        %p1541 = scmp.lt.s32.totalorder %s30, 1
        %s1542 = scalar_select %p1541, %s30, 1
        %p1543 = scmp.lt.s32.totalorder %s1540, 31
        %s1544 = scalar_select %p1543, %s1540, 31
        %s1545 = smul.addr %s1542, 32
        %s1546 = sadd.s32 %s1544, %s1545
        %s1547 = smul.addr %s1546, 8
        %s1548 = scalar_lea.vmem %s12, %s1547
      $region84: #{tpu_custom_call.1} parent=75 // pred_fallthru
        _
    $region76: #{tpu_custom_call.1} parent=5 // pred_fallthru
      _
  $region6: #{tpu_custom_call.1} parent=0 // loop_footer
    %s23 = sadd.s32 1, %s19
  $region7: #{tpu_custom_call.1} parent=0 // loop_footer_branch
    %18 = sbr.rel target = $region3
  $region8: #{tpu_custom_call.1} parent=0 // loop_exit
    _

</llo_original>
